<compile_context>
chip_gen: v5e
topology: v5e:2x2
jax: 0.10.0
libtpu: 0.0.40
codegen_flags: <defaults>
</compile_context>

<pallas_src>
import functools

import jax
import jax.numpy as jnp
from jax.experimental import pallas as pl
from jax.experimental.pallas import tpu as pltpu


# ---------------------------------------------------------------------------
# Pallas kernels
# ---------------------------------------------------------------------------
def _conv1_relu_pool_kernel(a_ref, w_ref, b_ref, o_ref, *, pool_size):
    """Fused conv1 GEMM + bias + ReLU + non-overlapping max-pool epilogue.

    a_ref : (pool_size, tp, Kp)  bf16  im2col rows, window-position leading
    w_ref : (Kp, Cout)           bf16
    b_ref : (1, Cout)            f32
    o_ref : (tp, Cout)           f32   pooled activations
    """
    w = w_ref[...]
    acc = jnp.dot(a_ref[0], w, preferred_element_type=jnp.float32)
    for p in range(1, pool_size):
        acc = jnp.maximum(
            acc, jnp.dot(a_ref[p], w, preferred_element_type=jnp.float32))
    # relu(max_w(conv_w) + b) == maxpool(relu(conv + b))  (ReLU is monotone,
    # bias identical across the window), so this matches the PyTorch order.
    o_ref[...] = jnp.maximum(acc + b_ref[...], 0.0).astype(o_ref.dtype)


def _conv2_relu_gap_fc_kernel(a_ref, w_ref, b_ref, pm_ref, fcw_ref, fcb_ref,
                              o_ref):
    """Fused conv2 GEMM + bias + ReLU + global-avg-pool + FC.

    a_ref   : (M, Kp)      bf16   im2col rows, row = n*S + spatial
    w_ref   : (Kp, Cout)   bf16
    b_ref   : (1, Cout)    f32
    pm_ref  : (N, M)       f32    averaging matrix (1/S on each sample's rows)
    fcw_ref : (Cout, nc)   f32
    fcb_ref : (1, nc)      f32
    o_ref   : (N, nc)      f32
    """
    acc = jnp.dot(a_ref[...], w_ref[...], preferred_element_type=jnp.float32)
    acc = jnp.maximum(acc + b_ref[...], 0.0)                       # (M, Cout)
    pooled = jnp.dot(pm_ref[...], acc, preferred_element_type=jnp.float32)
    out = jnp.dot(pooled, fcw_ref[...], preferred_element_type=jnp.float32)
    o_ref[...] = (out + fcb_ref[...]).astype(o_ref.dtype)


# ---------------------------------------------------------------------------
# Wrappers around pallas_call
# ---------------------------------------------------------------------------
def _pick_row_tile(p):
    """Largest 8-aligned divisor of p that yields >= 2 grid steps (megacore)."""
    for t in (256, 128, 64, 32, 16, 8):
        if p % t == 0 and p // t >= 2:
            return t
    return p


def conv1_relu_maxpool(x, w_torch, b, *, stride=2, padding=1, ksize=3, pool=2):
    """x:(N,D,H,W,Cin) NDHWC, w_torch:(Cout,Cin,kd,kh,kw), b:(Cout,).

    Returns max-pooled ReLU(conv) activations: (N, OD//pool, OH//pool, OW//pool, Cout).
    """
    N, D, H, W, Cin = x.shape
    Cout = w_torch.shape[0]
    OD = (D + 2 * padding - ksize) // stride + 1
    OH = (H + 2 * padding - ksize) // stride + 1
    OW = (W + 2 * padding - ksize) // stride + 1
    POD, POH, POW = OD // pool, OH // pool, OW // pool
    P = N * POD * POH * POW                    # pooled output rows
    K = ksize ** 3 * Cin
    Kp = ((K + 127) // 128) * 128              # lane-aligned contraction dim

    xp = jnp.pad(
        x, ((0, 0), (padding, padding), (padding, padding), (padding, padding),
            (0, 0)))
    sD = stride * pool                         # input step per pooled position
    blocks = []
    for wd in range(pool):
        for wh in range(pool):
            for ww in range(pool):
                taps = []
                for dk in range(ksize):
                    for dh in range(ksize):
                        for dw in range(ksize):
                            d0 = wd * stride + dk
                            h0 = wh * stride + dh
                            w0 = ww * stride + dw
                            taps.append(
                                xp[:,
                                   d0:d0 + sD * (POD - 1) + 1:sD,
                                   h0:h0 + sD * (POH - 1) + 1:sD,
                                   w0:w0 + sD * (POW - 1) + 1:sD, :])
                blk = jnp.stack(taps, axis=-2)        # (N,POD,POH,POW,27,Cin)
                blocks.append(blk.reshape(P, K))
    a = jnp.stack(blocks, axis=0)                      # (pool^3, P, K)
    a = jnp.pad(a.astype(jnp.bfloat16), ((0, 0), (0, 0), (0, Kp - K)))

    wm = jnp.transpose(w_torch, (2, 3, 4, 1, 0)).reshape(K, Cout)
    wm = jnp.pad(wm.astype(jnp.bfloat16), ((0, Kp - K), (0, 0)))
    b2 = b.reshape(1, Cout).astype(jnp.float32)

    tp = _pick_row_tile(P)
    kernel = functools.partial(_conv1_relu_pool_kernel, pool_size=pool ** 3)
    out = pl.pallas_call(
        kernel,
        out_shape=jax.ShapeDtypeStruct((P, Cout), jnp.float32),
        grid=(P // tp,),
        in_specs=[
            pl.BlockSpec((pool ** 3, tp, Kp), lambda i: (0, i, 0)),
            pl.BlockSpec((Kp, Cout), lambda i: (0, 0)),
            pl.BlockSpec((1, Cout), lambda i: (0, 0)),
        ],
        out_specs=pl.BlockSpec((tp, Cout), lambda i: (i, 0)),
        compiler_params=pltpu.CompilerParams(
            dimension_semantics=("parallel",)),
    )(a, wm, b2)
    return out.reshape(N, POD, POH, POW, Cout)


def conv2_relu_gap_fc(y, w_torch, b, fc_w, fc_b, *, stride=2, padding=1,
                      ksize=3):
    """y:(N,D,H,W,Cin) NDHWC, w_torch:(Cout,Cin,k,k,k), fc_w:(nc,Cout), fc_b:(nc,).

    Returns logits (N, nc): FC(avgpool(relu(conv2(y)))).
    """
    N, D, H, W, Cin = y.shape
    Cout = w_torch.shape[0]
    nc = fc_w.shape[0]
    OD = (D + 2 * padding - ksize) // stride + 1
    OH = (H + 2 * padding - ksize) // stride + 1
    OW = (W + 2 * padding - ksize) // stride + 1
    S = OD * OH * OW
    M = N * S
    K = ksize ** 3 * Cin
    Kp = ((K + 127) // 128) * 128

    yp = jnp.pad(
        y, ((0, 0), (padding, padding), (padding, padding), (padding, padding),
            (0, 0)))
    taps = []
    for dk in range(ksize):
        for dh in range(ksize):
            for dw in range(ksize):
                taps.append(
                    yp[:,
                       dk:dk + stride * (OD - 1) + 1:stride,
                       dh:dh + stride * (OH - 1) + 1:stride,
                       dw:dw + stride * (OW - 1) + 1:stride, :])
    a = jnp.stack(taps, axis=-2).reshape(M, K)         # rows = (n, od, oh, ow)
    a = jnp.pad(a.astype(jnp.bfloat16), ((0, 0), (0, Kp - K)))

    wm = jnp.transpose(w_torch, (2, 3, 4, 1, 0)).reshape(K, Cout)
    wm = jnp.pad(wm.astype(jnp.bfloat16), ((0, Kp - K), (0, 0)))
    b2 = b.reshape(1, Cout).astype(jnp.float32)

    pm = jnp.repeat(jnp.eye(N, dtype=jnp.float32), S, axis=1) / float(S)  # (N,M)
    fcw = fc_w.T.astype(jnp.float32)                   # (Cout, nc)
    fcb = fc_b.reshape(1, nc).astype(jnp.float32)

    return pl.pallas_call(
        _conv2_relu_gap_fc_kernel,
        out_shape=jax.ShapeDtypeStruct((N, nc), jnp.float32),
        grid=(1,),
        in_specs=[
            pl.BlockSpec((M, Kp), lambda i: (0, 0)),
            pl.BlockSpec((Kp, Cout), lambda i: (0, 0)),
            pl.BlockSpec((1, Cout), lambda i: (0, 0)),
            pl.BlockSpec((N, M), lambda i: (0, 0)),
            pl.BlockSpec((Cout, nc), lambda i: (0, 0)),
            pl.BlockSpec((1, nc), lambda i: (0, 0)),
        ],
        out_specs=pl.BlockSpec((N, nc), lambda i: (0, 0)),
    )(a, wm, b2, pm, fcw, fcb)


# ---------------------------------------------------------------------------
# Full forward pass (matches Efficient3DCNN.forward)
# ---------------------------------------------------------------------------
@jax.jit
def efficient3dcnn_forward(x_ncdhw, params):
    # NCDHW (PyTorch) -> NDHWC (kernel layout, channels on the lane axis)
    x = jnp.transpose(x_ncdhw, (0, 2, 3, 4, 1))
    # conv1 + ReLU + 2x2x2 maxpool (one Pallas kernel): (N,4,4,4,32)
    y = conv1_relu_maxpool(x, params["conv1_w"], params["conv1_b"],
                           stride=2, padding=1, ksize=3, pool=2)
    # conv2 + ReLU + global avg pool + FC (one Pallas kernel): (N, num_classes)
    return conv2_relu_gap_fc(y, params["conv2_w"], params["conv2_b"],
                             params["fc_w"], params["fc_b"],
                             stride=2, padding=1, ksize=3)


# Pure-JAX reference for a correctness sanity check.
def reference_forward(x_ncdhw, params):
    x = jnp.transpose(x_ncdhw, (0, 2, 3, 4, 1))
    w1 = jnp.transpose(params["conv1_w"], (2, 3, 4, 1, 0))
    w2 = jnp.transpose(params["conv2_w"], (2, 3, 4, 1, 0))
    dn = ("NDHWC", "DHWIO", "NDHWC")
    x = jax.lax.conv_general_dilated(
        x, w1, window_strides=(2, 2, 2), padding=((1, 1),) * 3,
        dimension_numbers=dn) + params["conv1_b"]
    x = jnp.maximum(x, 0.0)
    x = jax.lax.reduce_window(
        x, -jnp.inf, jax.lax.max, (1, 2, 2, 2, 1), (1, 2, 2, 2, 1), "VALID")
    x = jax.lax.conv_general_dilated(
        x, w2, window_strides=(2, 2, 2), padding=((1, 1),) * 3,
        dimension_numbers=dn) + params["conv2_b"]
    x = jnp.maximum(x, 0.0)
    x = jnp.mean(x, axis=(1, 2, 3))                    # (N, 64)
    return x @ params["fc_w"].T + params["fc_b"]


if __name__ == "__main__":
    in_channels, num_classes = 4, 10
    key = jax.random.PRNGKey(0)
    ks = jax.random.split(key, 7)
    params = {
        "conv1_w": jax.random.normal(ks[0], (32, in_channels, 3, 3, 3), jnp.float32) * 0.1,
        "conv1_b": jax.random.normal(ks[1], (32,), jnp.float32) * 0.1,
        "conv2_w": jax.random.normal(ks[2], (64, 32, 3, 3, 3), jnp.float32) * 0.05,
        "conv2_b": jax.random.normal(ks[3], (64,), jnp.float32) * 0.05,
        "fc_w": jax.random.normal(ks[4], (num_classes, 64), jnp.float32) * 0.1,
        "fc_b": jax.random.normal(ks[5], (num_classes,), jnp.float32) * 0.1,
    }
    x = jax.random.normal(ks[6], (2, in_channels, 16, 16, 16), jnp.float32)  # NCDHW

    out = jax.block_until_ready(efficient3dcnn_forward(x, params))
    ref = jax.block_until_ready(reference_forward(x, params))

    assert out.shape == (2, num_classes), out.shape
    assert jnp.all(jnp.isfinite(out))
    assert jnp.allclose(out, ref, rtol=3e-2, atol=3e-2), (
        "mismatch vs pure-JAX reference", out, ref)
    print("KERNEL_OK")
</pallas_src>

<mosaic_0001>
module attributes {stable_mosaic.version = 11 : i64} {
  func.func @_conv1_relu_pool_kernel(%arg0: i32, %arg1: memref<8x64x128xbf16, #tpu.memory_space<vmem>>, %arg2: memref<128x32xbf16, #tpu.memory_space<vmem>>, %arg3: memref<1x32xf32, #tpu.memory_space<vmem>>, %arg4: memref<64x32xf32, #tpu.memory_space<vmem>>) attributes {dimension_semantics = [#tpu.dimension_semantics<parallel>], iteration_bounds = array<i64: 2>, scalar_prefetch = 0 : i64, scratch_operands = 0 : i64, tpu.core_type = #tpu.core_type<tc>, window_params = [{transform_indices = @transform_0, window_bounds = array<i64: 8, 64, 128>}, {pipeline_mode = #tpu.pipeline_mode<synchronous>, transform_indices = @transform_1, window_bounds = array<i64: 128, 32>}, {pipeline_mode = #tpu.pipeline_mode<synchronous>, transform_indices = @transform_2, window_bounds = array<i64: 1, 32>}, {transform_indices = @transform_3, window_bounds = array<i64: 64, 32>}]} {
    %c0 = arith.constant 0 : index
    %c0_0 = arith.constant 0 : index
    %0 = vector.load %arg2[%c0, %c0_0] : memref<128x32xbf16, #tpu.memory_space<vmem>>, vector<128x32xbf16>
    %c0_1 = arith.constant 0 : index
    %c0_2 = arith.constant 0 : index
    %c0_3 = arith.constant 0 : index
    %1 = vector.load %arg1[%c0_1, %c0_2, %c0_3] : memref<8x64x128xbf16, #tpu.memory_space<vmem>>, vector<1x64x128xbf16>
    %2 = vector.shape_cast %1 : vector<1x64x128xbf16> to vector<64x128xbf16>
    %cst = arith.constant dense<0.000000e+00> : vector<64x32xf32>
    %3 = tpu.matmul %2, %0, %cst {dimension_numbers = #tpu.dot_dimension_numbers<[1], [0], [0], [1], [0, 0, 1, 1], [], []>} : vector<64x128xbf16>, vector<128x32xbf16>, vector<64x32xf32> -> vector<64x32xf32>
    %c1 = arith.constant 1 : index
    %c0_4 = arith.constant 0 : index
    %c0_5 = arith.constant 0 : index
    %4 = vector.load %arg1[%c1, %c0_4, %c0_5] : memref<8x64x128xbf16, #tpu.memory_space<vmem>>, vector<1x64x128xbf16>
    %5 = vector.shape_cast %4 : vector<1x64x128xbf16> to vector<64x128xbf16>
    %cst_6 = arith.constant dense<0.000000e+00> : vector<64x32xf32>
    %6 = tpu.matmul %5, %0, %cst_6 {dimension_numbers = #tpu.dot_dimension_numbers<[1], [0], [0], [1], [0, 0, 1, 1], [], []>} : vector<64x128xbf16>, vector<128x32xbf16>, vector<64x32xf32> -> vector<64x32xf32>
    %7 = arith.maximumf %3, %6 : vector<64x32xf32>
    %c2 = arith.constant 2 : index
    %c0_7 = arith.constant 0 : index
    %c0_8 = arith.constant 0 : index
    %8 = vector.load %arg1[%c2, %c0_7, %c0_8] : memref<8x64x128xbf16, #tpu.memory_space<vmem>>, vector<1x64x128xbf16>
    %9 = vector.shape_cast %8 : vector<1x64x128xbf16> to vector<64x128xbf16>
    %cst_9 = arith.constant dense<0.000000e+00> : vector<64x32xf32>
    %10 = tpu.matmul %9, %0, %cst_9 {dimension_numbers = #tpu.dot_dimension_numbers<[1], [0], [0], [1], [0, 0, 1, 1], [], []>} : vector<64x128xbf16>, vector<128x32xbf16>, vector<64x32xf32> -> vector<64x32xf32>
    %11 = arith.maximumf %7, %10 : vector<64x32xf32>
    %c3 = arith.constant 3 : index
    %c0_10 = arith.constant 0 : index
    %c0_11 = arith.constant 0 : index
    %12 = vector.load %arg1[%c3, %c0_10, %c0_11] : memref<8x64x128xbf16, #tpu.memory_space<vmem>>, vector<1x64x128xbf16>
    %13 = vector.shape_cast %12 : vector<1x64x128xbf16> to vector<64x128xbf16>
    %cst_12 = arith.constant dense<0.000000e+00> : vector<64x32xf32>
    %14 = tpu.matmul %13, %0, %cst_12 {dimension_numbers = #tpu.dot_dimension_numbers<[1], [0], [0], [1], [0, 0, 1, 1], [], []>} : vector<64x128xbf16>, vector<128x32xbf16>, vector<64x32xf32> -> vector<64x32xf32>
    %15 = arith.maximumf %11, %14 : vector<64x32xf32>
    %c4 = arith.constant 4 : index
    %c0_13 = arith.constant 0 : index
    %c0_14 = arith.constant 0 : index
    %16 = vector.load %arg1[%c4, %c0_13, %c0_14] : memref<8x64x128xbf16, #tpu.memory_space<vmem>>, vector<1x64x128xbf16>
    %17 = vector.shape_cast %16 : vector<1x64x128xbf16> to vector<64x128xbf16>
    %cst_15 = arith.constant dense<0.000000e+00> : vector<64x32xf32>
    %18 = tpu.matmul %17, %0, %cst_15 {dimension_numbers = #tpu.dot_dimension_numbers<[1], [0], [0], [1], [0, 0, 1, 1], [], []>} : vector<64x128xbf16>, vector<128x32xbf16>, vector<64x32xf32> -> vector<64x32xf32>
    %19 = arith.maximumf %15, %18 : vector<64x32xf32>
    %c5 = arith.constant 5 : index
    %c0_16 = arith.constant 0 : index
    %c0_17 = arith.constant 0 : index
    %20 = vector.load %arg1[%c5, %c0_16, %c0_17] : memref<8x64x128xbf16, #tpu.memory_space<vmem>>, vector<1x64x128xbf16>
    %21 = vector.shape_cast %20 : vector<1x64x128xbf16> to vector<64x128xbf16>
    %cst_18 = arith.constant dense<0.000000e+00> : vector<64x32xf32>
    %22 = tpu.matmul %21, %0, %cst_18 {dimension_numbers = #tpu.dot_dimension_numbers<[1], [0], [0], [1], [0, 0, 1, 1], [], []>} : vector<64x128xbf16>, vector<128x32xbf16>, vector<64x32xf32> -> vector<64x32xf32>
    %23 = arith.maximumf %19, %22 : vector<64x32xf32>
    %c6 = arith.constant 6 : index
    %c0_19 = arith.constant 0 : index
    %c0_20 = arith.constant 0 : index
    %24 = vector.load %arg1[%c6, %c0_19, %c0_20] : memref<8x64x128xbf16, #tpu.memory_space<vmem>>, vector<1x64x128xbf16>
    %25 = vector.shape_cast %24 : vector<1x64x128xbf16> to vector<64x128xbf16>
    %cst_21 = arith.constant dense<0.000000e+00> : vector<64x32xf32>
    %26 = tpu.matmul %25, %0, %cst_21 {dimension_numbers = #tpu.dot_dimension_numbers<[1], [0], [0], [1], [0, 0, 1, 1], [], []>} : vector<64x128xbf16>, vector<128x32xbf16>, vector<64x32xf32> -> vector<64x32xf32>
    %27 = arith.maximumf %23, %26 : vector<64x32xf32>
    %c7 = arith.constant 7 : index
    %c0_22 = arith.constant 0 : index
    %c0_23 = arith.constant 0 : index
    %28 = vector.load %arg1[%c7, %c0_22, %c0_23] : memref<8x64x128xbf16, #tpu.memory_space<vmem>>, vector<1x64x128xbf16>
    %29 = vector.shape_cast %28 : vector<1x64x128xbf16> to vector<64x128xbf16>
    %cst_24 = arith.constant dense<0.000000e+00> : vector<64x32xf32>
    %30 = tpu.matmul %29, %0, %cst_24 {dimension_numbers = #tpu.dot_dimension_numbers<[1], [0], [0], [1], [0, 0, 1, 1], [], []>} : vector<64x128xbf16>, vector<128x32xbf16>, vector<64x32xf32> -> vector<64x32xf32>
    %31 = arith.maximumf %27, %30 : vector<64x32xf32>
    %c0_25 = arith.constant 0 : index
    %c0_26 = arith.constant 0 : index
    %32 = vector.load %arg3[%c0_25, %c0_26] : memref<1x32xf32, #tpu.memory_space<vmem>>, vector<1x32xf32>
    %33 = vector.broadcast %32 : vector<1x32xf32> to vector<64x32xf32>
    %34 = arith.addf %31, %33 : vector<64x32xf32>
    %cst_27 = arith.constant 0.000000e+00 : f32
    %35 = vector.broadcast %cst_27 : f32 to vector<64x32xf32>
    %36 = arith.maximumf %34, %35 : vector<64x32xf32>
    %c0_28 = arith.constant 0 : index
    %c0_29 = arith.constant 0 : index
    %37 = vector.load %arg4[%c0_28, %c0_29] : memref<64x32xf32, #tpu.memory_space<vmem>>, vector<64x32xf32>
    tpu.vector_store %arg4[%c0_28, %c0_29], %36 {strides = array<i32>} : memref<64x32xf32, #tpu.memory_space<vmem>>, vector<64x32xf32>,
    return
  }
  func.func @transform_0(%arg0: i32) -> (i32, i32, i32) {
    %c0_i32 = arith.constant 0 : i32
    %c0_i32_0 = arith.constant 0 : i32
    %c0_i32_1 = arith.constant 0 : i32
    return %c0_i32, %arg0, %c0_i32_0 : i32, i32, i32
  }
  func.func @transform_1(%arg0: i32) -> (i32, i32) {
    %c0_i32 = arith.constant 0 : i32
    %c0_i32_0 = arith.constant 0 : i32
    %c0_i32_1 = arith.constant 0 : i32
    return %c0_i32, %c0_i32_0 : i32, i32
  }
  func.func @transform_2(%arg0: i32) -> (i32, i32) {
    %c0_i32 = arith.constant 0 : i32
    %c0_i32_0 = arith.constant 0 : i32
    %c0_i32_1 = arith.constant 0 : i32
    return %c0_i32, %c0_i32_0 : i32, i32
  }
  func.func @transform_3(%arg0: i32) -> (i32, i32) {
    %c0_i32 = arith.constant 0 : i32
    %c0_i32_0 = arith.constant 0 : i32
    return %arg0, %c0_i32 : i32, i32
  }
}

module attributes {stable_mosaic.version = 11 : i64} {
  func.func @_conv2_relu_gap_fc_kernel(%arg0: i32, %arg1: memref<16x896xbf16, #tpu.memory_space<vmem>>, %arg2: memref<896x64xbf16, #tpu.memory_space<vmem>>, %arg3: memref<1x64xf32, #tpu.memory_space<vmem>>, %arg4: memref<2x16xf32, #tpu.memory_space<vmem>>, %arg5: memref<64x10xf32, #tpu.memory_space<vmem>>, %arg6: memref<1x10xf32, #tpu.memory_space<vmem>>, %arg7: memref<2x10xf32, #tpu.memory_space<vmem>>) attributes {dimension_semantics = [#tpu.dimension_semantics<arbitrary>], iteration_bounds = array<i64: 1>, scalar_prefetch = 0 : i64, scratch_operands = 0 : i64, tpu.core_type = #tpu.core_type<tc>, window_params = [{pipeline_mode = #tpu.pipeline_mode<synchronous>, transform_indices = @transform_0, window_bounds = array<i64: 16, 896>}, {pipeline_mode = #tpu.pipeline_mode<synchronous>, transform_indices = @transform_1, window_bounds = array<i64: 896, 64>}, {pipeline_mode = #tpu.pipeline_mode<synchronous>, transform_indices = @transform_2, window_bounds = array<i64: 1, 64>}, {pipeline_mode = #tpu.pipeline_mode<synchronous>, transform_indices = @transform_3, window_bounds = array<i64: 2, 16>}, {pipeline_mode = #tpu.pipeline_mode<synchronous>, transform_indices = @transform_4, window_bounds = array<i64: 64, 10>}, {pipeline_mode = #tpu.pipeline_mode<synchronous>, transform_indices = @transform_5, window_bounds = array<i64: 1, 10>}, {pipeline_mode = #tpu.pipeline_mode<synchronous>, transform_indices = @transform_6, window_bounds = array<i64: 2, 10>}]} {
    %c0 = arith.constant 0 : index
    %c0_0 = arith.constant 0 : index
    %0 = vector.load %arg1[%c0, %c0_0] : memref<16x896xbf16, #tpu.memory_space<vmem>>, vector<16x896xbf16>
    %c0_1 = arith.constant 0 : index
    %c0_2 = arith.constant 0 : index
    %1 = vector.load %arg2[%c0_1, %c0_2] : memref<896x64xbf16, #tpu.memory_space<vmem>>, vector<896x64xbf16>
    %cst = arith.constant dense<0.000000e+00> : vector<16x64xf32>
    %2 = tpu.matmul %0, %1, %cst {dimension_numbers = #tpu.dot_dimension_numbers<[1], [0], [0], [1], [0, 0, 1, 1], [], []>} : vector<16x896xbf16>, vector<896x64xbf16>, vector<16x64xf32> -> vector<16x64xf32>
    %c0_3 = arith.constant 0 : index
    %c0_4 = arith.constant 0 : index
    %3 = vector.load %arg3[%c0_3, %c0_4] : memref<1x64xf32, #tpu.memory_space<vmem>>, vector<1x64xf32>
    %4 = vector.broadcast %3 : vector<1x64xf32> to vector<16x64xf32>
    %5 = arith.addf %2, %4 : vector<16x64xf32>
    %cst_5 = arith.constant 0.000000e+00 : f32
    %6 = vector.broadcast %cst_5 : f32 to vector<16x64xf32>
    %7 = arith.maximumf %5, %6 : vector<16x64xf32>
    %c0_6 = arith.constant 0 : index
    %c0_7 = arith.constant 0 : index
    %8 = vector.load %arg4[%c0_6, %c0_7] : memref<2x16xf32, #tpu.memory_space<vmem>>, vector<2x16xf32>
    %cst_8 = arith.constant dense<0.000000e+00> : vector<2x64xf32>
    %9 = tpu.matmul %8, %7, %cst_8 {dimension_numbers = #tpu.dot_dimension_numbers<[1], [0], [0], [1], [0, 0, 1, 1], [], []>} : vector<2x16xf32>, vector<16x64xf32>, vector<2x64xf32> -> vector<2x64xf32>
    %c0_9 = arith.constant 0 : index
    %c0_10 = arith.constant 0 : index
    %10 = vector.load %arg5[%c0_9, %c0_10] : memref<64x10xf32, #tpu.memory_space<vmem>>, vector<64x10xf32>
    %cst_11 = arith.constant dense<0.000000e+00> : vector<2x10xf32>
    %11 = tpu.matmul %9, %10, %cst_11 {dimension_numbers = #tpu.dot_dimension_numbers<[1], [0], [0], [1], [0, 0, 1, 1], [], []>} : vector<2x64xf32>, vector<64x10xf32>, vector<2x10xf32> -> vector<2x10xf32>
    %c0_12 = arith.constant 0 : index
    %c0_13 = arith.constant 0 : index
    %12 = vector.load %arg6[%c0_12, %c0_13] : memref<1x10xf32, #tpu.memory_space<vmem>>, vector<1x10xf32>
    %13 = vector.broadcast %12 : vector<1x10xf32> to vector<2x10xf32>
    %14 = arith.addf %11, %13 : vector<2x10xf32>
    %c0_14 = arith.constant 0 : index
    %c0_15 = arith.constant 0 : index
    %15 = vector.load %arg7[%c0_14, %c0_15] : memref<2x10xf32, #tpu.memory_space<vmem>>, vector<2x10xf32>
    tpu.vector_store %arg7[%c0_14, %c0_15], %14 {strides = array<i32>} : memref<2x10xf32, #tpu.memory_space<vmem>>, vector<2x10xf32>,
    return
  }
  func.func @transform_0(%arg0: i32) -> (i32, i32) {
    %c0_i32 = arith.constant 0 : i32
    %c0_i32_0 = arith.constant 0 : i32
    %c0_i32_1 = arith.constant 0 : i32
    return %c0_i32, %c0_i32_0 : i32, i32
  }
  func.func @transform_1(%arg0: i32) -> (i32, i32) {
    %c0_i32 = arith.constant 0 : i32
    %c0_i32_0 = arith.constant 0 : i32
    %c0_i32_1 = arith.constant 0 : i32
    return %c0_i32, %c0_i32_0 : i32, i32
  }
  func.func @transform_2(%arg0: i32) -> (i32, i32) {
    %c0_i32 = arith.constant 0 : i32
    %c0_i32_0 = arith.constant 0 : i32
    %c0_i32_1 = arith.constant 0 : i32
    return %c0_i32, %c0_i32_0 : i32, i32
  }
  func.func @transform_3(%arg0: i32) -> (i32, i32) {
    %c0_i32 = arith.constant 0 : i32
    %c0_i32_0 = arith.constant 0 : i32
    %c0_i32_1 = arith.constant 0 : i32
    return %c0_i32, %c0_i32_0 : i32, i32
  }
  func.func @transform_4(%arg0: i32) -> (i32, i32) {
    %c0_i32 = arith.constant 0 : i32
    %c0_i32_0 = arith.constant 0 : i32
    %c0_i32_1 = arith.constant 0 : i32
    return %c0_i32, %c0_i32_0 : i32, i32
  }
  func.func @transform_5(%arg0: i32) -> (i32, i32) {
    %c0_i32 = arith.constant 0 : i32
    %c0_i32_0 = arith.constant 0 : i32
    %c0_i32_1 = arith.constant 0 : i32
    return %c0_i32, %c0_i32_0 : i32, i32
  }
  func.func @transform_6(%arg0: i32) -> (i32, i32) {
    %c0_i32 = arith.constant 0 : i32
    %c0_i32_0 = arith.constant 0 : i32
    %c0_i32_1 = arith.constant 0 : i32
    return %c0_i32, %c0_i32_0 : i32, i32
  }
}

</mosaic_0001>

<llo_original>
// kernel: efficient3dcnn_forward.2
$region0: #{efficient3dcnn_forward.2}
  #allocation0 [shape = 'u32[]', space=smem, size = 0x4, offset = 0x4, fixed_abs, tag = 'smem constant byte address 0x4 - core index']
  #allocation1 [shape = 'u32[72,128]{1,0:T(1,128)}', space=vmem, size = 0x9000, scoped, tag = 'internal scratch']
  %s0 = inlined_call_operand.vmem [shape: bf16[8,128,128], index: 0, kind: input, shape index: {}]
  %s1 = inlined_call_operand.vmem [shape: bf16[128,32], index: 1, kind: input, shape index: {}]
  %s2 = inlined_call_operand.vmem [shape: f32[1,32], index: 2, kind: input, shape index: {}]
  %s3 = inlined_call_operand.vmem [shape: f32[128,32], index: 3, kind: output, shape index: {}]
  %s4 = sld [smem:[#allocation0]]
  $region86: #{efficient3dcnn_forward.2} parent=0
    _
  %s6 = ssub.s32 1, %s4
  %s7 = scalar_select 0, %s6, %s4
  $region1: #{efficient3dcnn_forward.2} parent=0
    #allocation2 [shape = 'u8[262144]{0}', space=vmem, size = 0x40000, scoped, tag = 'input window, operand 0']
    loop: start=0, step=1, limit=4
    $region2: #{efficient3dcnn_forward.2} parent=1 // loop_pre_header
      _
    $region3: #{efficient3dcnn_forward.2} parent=1 // loop_header
      %s9 = sphi 0, %s13
      %p10 = scmp.ge.s32.totalorder %s9, 4
      %s19 = sphi 0, %s21
      %s22 = sphi 0, %s19
      %s23 = sphi 0, %s22
      %s39 = sphi 0, %s23
      %s43 = sphi 0, %s43
      %s45 = sphi 0, %s43
      %s46 = sphi 0, %s45
      %s60 = sphi 0, %s46
      %s64 = sphi 0, %s64
      %s66 = sphi 0, %s64
      %s67 = sphi 0, %s66
      %s81 = sphi 0, %s67
      %s87 = sphi 0, %s89
      %s90 = sphi 0, %s87
      %s91 = sphi 0, %s90
      %s107 = sphi 0, %s91
    $region4: #{efficient3dcnn_forward.2} parent=1 // loop_header_branch
      %12 = sbr.rel (%p10) target = $region8
    $region5: #{efficient3dcnn_forward.2} parent=1 // loop_body
      %s14 = ssub.s32 %s9, 1
      %s15 = ssub.s32 %s9, 2
      %s16 = sadd.s32 %s9, 1
      %s17 = ssub.s32 %s9, %s16
      %p18 = scmp.eq.s32.totalorder %s17, 0
      %s20 = sadd.s32 %s19, 1
      %s21 = scalar_select %p18, %s19, %s20
      %p24 = pneg %p18
      %p25 = scmp.eq.s32.totalorder %s9, 1
      %p26 = por %p24, %p25
      %p27 = scmp.ne.s32.totalorder %s19, %s22
      %p28 = scmp.eq.s32.totalorder %s9, 0
      %p29 = por %p27, %p28
      %p30 = scmp.ne.s32.totalorder %s19, %s22
      %p31 = scmp.eq.s32.totalorder %s14, 1
      %p32 = por %p30, %p31
      %p33 = scmp.ne.s32.totalorder %s22, %s23
      %p34 = scmp.eq.s32.totalorder %s14, 0
      %p35 = por %p33, %p34
      %p36 = scmp.ne.s32.totalorder %s22, %s23
      %p37 = scmp.eq.s32.totalorder %s15, 1
      %p38 = por %p36, %p37
      %p40 = scmp.ne.s32.totalorder %s23, %s39
      %p41 = scmp.eq.s32.totalorder %s15, 0
      %p42 = por %p40, %p41
      %s44 = sadd.s32 %s43, 1
      %p47 = scmp.eq.s32.totalorder %s9, 1
      %p48 = scmp.ne.s32.totalorder %s43, %s45
      %p49 = scmp.eq.s32.totalorder %s9, 0
      %p50 = por %p48, %p49
      %p51 = scmp.ne.s32.totalorder %s43, %s45
      %p52 = scmp.eq.s32.totalorder %s14, 1
      %p53 = por %p51, %p52
      %p54 = scmp.ne.s32.totalorder %s45, %s46
      %p55 = scmp.eq.s32.totalorder %s14, 0
      %p56 = por %p54, %p55
      %p57 = scmp.ne.s32.totalorder %s45, %s46
      %p58 = scmp.eq.s32.totalorder %s15, 1
      %p59 = por %p57, %p58
      %p61 = scmp.ne.s32.totalorder %s46, %s60
      %p62 = scmp.eq.s32.totalorder %s15, 0
      %p63 = por %p61, %p62
      %s65 = sadd.s32 %s64, 1
      %p68 = scmp.eq.s32.totalorder %s9, 1
      %p69 = scmp.ne.s32.totalorder %s64, %s66
      %p70 = scmp.eq.s32.totalorder %s9, 0
      %p71 = por %p69, %p70
      %p72 = scmp.ne.s32.totalorder %s64, %s66
      %p73 = scmp.eq.s32.totalorder %s14, 1
      %p74 = por %p72, %p73
      %p75 = scmp.ne.s32.totalorder %s66, %s67
      %p76 = scmp.eq.s32.totalorder %s14, 0
      %p77 = por %p75, %p76
      %p78 = scmp.ne.s32.totalorder %s66, %s67
      %p79 = scmp.eq.s32.totalorder %s15, 1
      %p80 = por %p78, %p79
      %p82 = scmp.ne.s32.totalorder %s67, %s81
      %p83 = scmp.eq.s32.totalorder %s15, 0
      %p84 = por %p82, %p83
      %s85 = ssub.s32 %s9, %s16
      %p86 = scmp.eq.s32.totalorder %s85, 0
      %s88 = sadd.s32 %s87, 1
      %s89 = scalar_select %p86, %s87, %s88
      %p92 = pneg %p86
      %p93 = scmp.eq.s32.totalorder %s9, 1
      %p94 = por %p92, %p93
      %p95 = scmp.ne.s32.totalorder %s87, %s90
      %p96 = scmp.eq.s32.totalorder %s9, 0
      %p97 = por %p95, %p96
      %p98 = scmp.ne.s32.totalorder %s87, %s90
      %p99 = scmp.eq.s32.totalorder %s14, 1
      %p100 = por %p98, %p99
      %p101 = scmp.ne.s32.totalorder %s90, %s91
      %p102 = scmp.eq.s32.totalorder %s14, 0
      %p103 = por %p101, %p102
      %p104 = scmp.ne.s32.totalorder %s90, %s91
      %p105 = scmp.eq.s32.totalorder %s15, 1
      %p106 = por %p104, %p105
      %p108 = scmp.ne.s32.totalorder %s91, %s107
      %p109 = scmp.eq.s32.totalorder %s15, 0
      %p110 = por %p108, %p109
      %p111 = scmp.le.s32.totalorder 1, %s9
      %p112 = scmp.lt.s32.totalorder %s9, 3
      %p113 = pnand %p111, %p112
      %p114 = pneg %p113
      // Predicated region
      $region9: #{efficient3dcnn_forward.2} parent=5 // pred_check
        _
      $region10: #{efficient3dcnn_forward.2} parent=5 // pred_check_branch
        %116 = sbr.rel (%p113) target = $region12
      $region11: #{efficient3dcnn_forward.2} parent=5 // pred_region
        %s117 = ssub.s32 %s9, 1
        // Predicated region
        $region13: #{efficient3dcnn_forward.2} parent=11 // pred_check
          %p118 = pneg %p56
        $region14: #{efficient3dcnn_forward.2} parent=11 // pred_check_branch
          %120 = sbr.rel (%p118) target = $region16
        $region15: #{efficient3dcnn_forward.2} parent=11 // pred_region
          _
        $region16: #{efficient3dcnn_forward.2} parent=11 // pred_fallthru
          _
        // Predicated region
        $region17: #{efficient3dcnn_forward.2} parent=11 // pred_check
          %p121 = pneg %p77
        $region18: #{efficient3dcnn_forward.2} parent=11 // pred_check_branch
          %123 = sbr.rel (%p121) target = $region20
        $region19: #{efficient3dcnn_forward.2} parent=11 // pred_region
          _
        $region20: #{efficient3dcnn_forward.2} parent=11 // pred_fallthru
          _
      $region12: #{efficient3dcnn_forward.2} parent=5 // pred_fallthru
        _
      %p124 = scmp.lt.s32.totalorder %s9, 2
      // Predicated region
      $region21: #{efficient3dcnn_forward.2} parent=5 // pred_check
        %p125 = pneg %p124
      $region22: #{efficient3dcnn_forward.2} parent=5 // pred_check_branch
        %127 = sbr.rel (%p125) target = $region24
      $region23: #{efficient3dcnn_forward.2} parent=5 // pred_region
        // Predicated region
        $region25: #{efficient3dcnn_forward.2} parent=23 // pred_check
          %p128 = pneg %p29
        $region26: #{efficient3dcnn_forward.2} parent=23 // pred_check_branch
          %130 = sbr.rel (%p128) target = $region28
        $region27: #{efficient3dcnn_forward.2} parent=23 // pred_region
          %s131 = sand.u32 %s19, 1
          %s132 = sand.u32 %s19, 1
          %s133 = smul.addr %s132, 256
          %s134 = scalar_lea.vmem [#allocation2], %s133
          %s135 = smul.u32 8, %s9
          %s136 = smul.addr %s135, 4
          %s137 = scalar_lea.vmem %s0, %s136
          // Predicated region
          $region29: #{efficient3dcnn_forward.2} parent=27 // pred_check
            _
          $region30: #{efficient3dcnn_forward.2} parent=27 // pred_check_branch
            %139 = sbr.rel (0) target = $region32
          $region31: #{efficient3dcnn_forward.2} parent=27 // pred_region
            // Predicated region
            $region33: #{efficient3dcnn_forward.2} parent=31 // pred_check
              _
            $region34: #{efficient3dcnn_forward.2} parent=31 // pred_check_branch
              %141 = sbr.rel target = $region36
            $region35: #{efficient3dcnn_forward.2} parent=31 // pred_region
              // Predicated region
              $region48: #{efficient3dcnn_forward.2} parent=35 // pred_check
                _
              $region49: #{efficient3dcnn_forward.2} parent=35 // pred_check_branch
                %283 = sbr.rel (0) target = $region51
              $region50: #{efficient3dcnn_forward.2} parent=35 // pred_region
                loop: start=0, step=1, limit=1
                $region52: #{efficient3dcnn_forward.2} parent=50 // loop_pre_header
                  _
                $region53: #{efficient3dcnn_forward.2} parent=50 // loop_header
                  %s285 = sphi 0, %s289
                  %p286 = scmp.ge.s32.totalorder %s285, 1
                  %s290 = sphi %s137, %s137
                  %s291 = sphi %s134, %s134
                $region54: #{efficient3dcnn_forward.2} parent=50 // loop_header_branch
                  %288 = sbr.rel (%p286) target = $region58
                $region55: #{efficient3dcnn_forward.2} parent=50 // loop_body
                  _
                $region56: #{efficient3dcnn_forward.2} parent=50 // loop_footer
                  %s289 = sadd.s32 1, %s285
                $region57: #{efficient3dcnn_forward.2} parent=50 // loop_footer_branch
                  %284 = sbr.rel target = $region53
                $region58: #{efficient3dcnn_forward.2} parent=50 // loop_exit
                  _
                %s293 = ssub.s32 16, 1
                loop: start=0, step=1, limit=1
                $region59: #{efficient3dcnn_forward.2} parent=50 // loop_pre_header
                  _
                $region60: #{efficient3dcnn_forward.2} parent=50 // loop_header
                  %s295 = sphi 0, %s299
                  %p296 = scmp.ge.s32.totalorder %s295, 1
                  %s300 = sphi %s137, %s137
                  %s301 = sphi %s134, %s134
                $region61: #{efficient3dcnn_forward.2} parent=50 // loop_header_branch
                  %298 = sbr.rel (%p296) target = $region65
                $region62: #{efficient3dcnn_forward.2} parent=50 // loop_body
                  %v302 = vld [vmem:[%s300] sm:%s293]
                  %303 = vst [vmem:[%s301] sm:%s293] %v302
                  %v304 = vld [vmem:[%s300 + $0x4] sm:%s293]
                  %305 = vst [vmem:[%s301 + $0x4] sm:%s293] %v304
                  %v306 = vld [vmem:[%s300 + $0x8] sm:%s293]
                  %307 = vst [vmem:[%s301 + $0x8] sm:%s293] %v306
                  %v308 = vld [vmem:[%s300 + $0xc] sm:%s293]
                  %309 = vst [vmem:[%s301 + $0xc] sm:%s293] %v308
                  %v310 = vld [vmem:[%s300 + $0x10] sm:%s293]
                  %311 = vst [vmem:[%s301 + $0x10] sm:%s293] %v310
                  %v312 = vld [vmem:[%s300 + $0x14] sm:%s293]
                  %313 = vst [vmem:[%s301 + $0x14] sm:%s293] %v312
                  %v314 = vld [vmem:[%s300 + $0x18] sm:%s293]
                  %315 = vst [vmem:[%s301 + $0x18] sm:%s293] %v314
                  %v316 = vld [vmem:[%s300 + $0x1c] sm:%s293]
                  %317 = vst [vmem:[%s301 + $0x1c] sm:%s293] %v316
                  %v318 = vld [vmem:[%s300 + $0x40] sm:%s293]
                  %319 = vst [vmem:[%s301 + $0x20] sm:%s293] %v318
                  %v320 = vld [vmem:[%s300 + $0x44] sm:%s293]
                  %321 = vst [vmem:[%s301 + $0x24] sm:%s293] %v320
                  %v322 = vld [vmem:[%s300 + $0x48] sm:%s293]
                  %323 = vst [vmem:[%s301 + $0x28] sm:%s293] %v322
                  %v324 = vld [vmem:[%s300 + $0x4c] sm:%s293]
                  %325 = vst [vmem:[%s301 + $0x2c] sm:%s293] %v324
                  %v326 = vld [vmem:[%s300 + $0x50] sm:%s293]
                  %327 = vst [vmem:[%s301 + $0x30] sm:%s293] %v326
                  %v328 = vld [vmem:[%s300 + $0x54] sm:%s293]
                  %329 = vst [vmem:[%s301 + $0x34] sm:%s293] %v328
                  %v330 = vld [vmem:[%s300 + $0x58] sm:%s293]
                  %331 = vst [vmem:[%s301 + $0x38] sm:%s293] %v330
                  %v332 = vld [vmem:[%s300 + $0x5c] sm:%s293]
                  %333 = vst [vmem:[%s301 + $0x3c] sm:%s293] %v332
                  %v334 = vld [vmem:[%s300 + $0x80] sm:%s293]
                  %335 = vst [vmem:[%s301 + $0x40] sm:%s293] %v334
                  %v336 = vld [vmem:[%s300 + $0x84] sm:%s293]
                  %337 = vst [vmem:[%s301 + $0x44] sm:%s293] %v336
                  %v338 = vld [vmem:[%s300 + $0x88] sm:%s293]
                  %339 = vst [vmem:[%s301 + $0x48] sm:%s293] %v338
                  %v340 = vld [vmem:[%s300 + $0x8c] sm:%s293]
                  %341 = vst [vmem:[%s301 + $0x4c] sm:%s293] %v340
                  %v342 = vld [vmem:[%s300 + $0x90] sm:%s293]
                  %343 = vst [vmem:[%s301 + $0x50] sm:%s293] %v342
                  %v344 = vld [vmem:[%s300 + $0x94] sm:%s293]
                  %345 = vst [vmem:[%s301 + $0x54] sm:%s293] %v344
                  %v346 = vld [vmem:[%s300 + $0x98] sm:%s293]
                  %347 = vst [vmem:[%s301 + $0x58] sm:%s293] %v346
                  %v348 = vld [vmem:[%s300 + $0x9c] sm:%s293]
                  %349 = vst [vmem:[%s301 + $0x5c] sm:%s293] %v348
                  %v350 = vld [vmem:[%s300 + $0xc0] sm:%s293]
                  %351 = vst [vmem:[%s301 + $0x60] sm:%s293] %v350
                  %v352 = vld [vmem:[%s300 + $0xc4] sm:%s293]
                  %353 = vst [vmem:[%s301 + $0x64] sm:%s293] %v352
                  %v354 = vld [vmem:[%s300 + $0xc8] sm:%s293]
                  %355 = vst [vmem:[%s301 + $0x68] sm:%s293] %v354
                  %v356 = vld [vmem:[%s300 + $0xcc] sm:%s293]
                  %357 = vst [vmem:[%s301 + $0x6c] sm:%s293] %v356
                  %v358 = vld [vmem:[%s300 + $0xd0] sm:%s293]
                  %359 = vst [vmem:[%s301 + $0x70] sm:%s293] %v358
                  %v360 = vld [vmem:[%s300 + $0xd4] sm:%s293]
                  %361 = vst [vmem:[%s301 + $0x74] sm:%s293] %v360
                  %v362 = vld [vmem:[%s300 + $0xd8] sm:%s293]
                  %363 = vst [vmem:[%s301 + $0x78] sm:%s293] %v362
                  %v364 = vld [vmem:[%s300 + $0xdc] sm:%s293]
                  %365 = vst [vmem:[%s301 + $0x7c] sm:%s293] %v364
                  %v366 = vld [vmem:[%s300 + $0x100] sm:%s293]
                  %367 = vst [vmem:[%s301 + $0x80] sm:%s293] %v366
                  %v368 = vld [vmem:[%s300 + $0x104] sm:%s293]
                  %369 = vst [vmem:[%s301 + $0x84] sm:%s293] %v368
                  %v370 = vld [vmem:[%s300 + $0x108] sm:%s293]
                  %371 = vst [vmem:[%s301 + $0x88] sm:%s293] %v370
                  %v372 = vld [vmem:[%s300 + $0x10c] sm:%s293]
                  %373 = vst [vmem:[%s301 + $0x8c] sm:%s293] %v372
                  %v374 = vld [vmem:[%s300 + $0x110] sm:%s293]
                  %375 = vst [vmem:[%s301 + $0x90] sm:%s293] %v374
                  %v376 = vld [vmem:[%s300 + $0x114] sm:%s293]
                  %377 = vst [vmem:[%s301 + $0x94] sm:%s293] %v376
                  %v378 = vld [vmem:[%s300 + $0x118] sm:%s293]
                  %379 = vst [vmem:[%s301 + $0x98] sm:%s293] %v378
                  %v380 = vld [vmem:[%s300 + $0x11c] sm:%s293]
                  %381 = vst [vmem:[%s301 + $0x9c] sm:%s293] %v380
                  %v382 = vld [vmem:[%s300 + $0x140] sm:%s293]
                  %383 = vst [vmem:[%s301 + $0xa0] sm:%s293] %v382
                  %v384 = vld [vmem:[%s300 + $0x144] sm:%s293]
                  %385 = vst [vmem:[%s301 + $0xa4] sm:%s293] %v384
                  %v386 = vld [vmem:[%s300 + $0x148] sm:%s293]
                  %387 = vst [vmem:[%s301 + $0xa8] sm:%s293] %v386
                  %v388 = vld [vmem:[%s300 + $0x14c] sm:%s293]
                  %389 = vst [vmem:[%s301 + $0xac] sm:%s293] %v388
                  %v390 = vld [vmem:[%s300 + $0x150] sm:%s293]
                  %391 = vst [vmem:[%s301 + $0xb0] sm:%s293] %v390
                  %v392 = vld [vmem:[%s300 + $0x154] sm:%s293]
                  %393 = vst [vmem:[%s301 + $0xb4] sm:%s293] %v392
                  %v394 = vld [vmem:[%s300 + $0x158] sm:%s293]
                  %395 = vst [vmem:[%s301 + $0xb8] sm:%s293] %v394
                  %v396 = vld [vmem:[%s300 + $0x15c] sm:%s293]
                  %397 = vst [vmem:[%s301 + $0xbc] sm:%s293] %v396
                  %v398 = vld [vmem:[%s300 + $0x180] sm:%s293]
                  %399 = vst [vmem:[%s301 + $0xc0] sm:%s293] %v398
                  %v400 = vld [vmem:[%s300 + $0x184] sm:%s293]
                  %401 = vst [vmem:[%s301 + $0xc4] sm:%s293] %v400
                  %v402 = vld [vmem:[%s300 + $0x188] sm:%s293]
                  %403 = vst [vmem:[%s301 + $0xc8] sm:%s293] %v402
                  %v404 = vld [vmem:[%s300 + $0x18c] sm:%s293]
                  %405 = vst [vmem:[%s301 + $0xcc] sm:%s293] %v404
                  %v406 = vld [vmem:[%s300 + $0x190] sm:%s293]
                  %407 = vst [vmem:[%s301 + $0xd0] sm:%s293] %v406
                  %v408 = vld [vmem:[%s300 + $0x194] sm:%s293]
                  %409 = vst [vmem:[%s301 + $0xd4] sm:%s293] %v408
                  %v410 = vld [vmem:[%s300 + $0x198] sm:%s293]
                  %411 = vst [vmem:[%s301 + $0xd8] sm:%s293] %v410
                  %v412 = vld [vmem:[%s300 + $0x19c] sm:%s293]
                  %413 = vst [vmem:[%s301 + $0xdc] sm:%s293] %v412
                  %v414 = vld [vmem:[%s300 + $0x1c0] sm:%s293]
                  %415 = vst [vmem:[%s301 + $0xe0] sm:%s293] %v414
                  %v416 = vld [vmem:[%s300 + $0x1c4] sm:%s293]
                  %417 = vst [vmem:[%s301 + $0xe4] sm:%s293] %v416
                  %v418 = vld [vmem:[%s300 + $0x1c8] sm:%s293]
                  %419 = vst [vmem:[%s301 + $0xe8] sm:%s293] %v418
                  %v420 = vld [vmem:[%s300 + $0x1cc] sm:%s293]
                  %421 = vst [vmem:[%s301 + $0xec] sm:%s293] %v420
                  %v422 = vld [vmem:[%s300 + $0x1d0] sm:%s293]
                  %423 = vst [vmem:[%s301 + $0xf0] sm:%s293] %v422
                  %v424 = vld [vmem:[%s300 + $0x1d4] sm:%s293]
                  %425 = vst [vmem:[%s301 + $0xf4] sm:%s293] %v424
                  %v426 = vld [vmem:[%s300 + $0x1d8] sm:%s293]
                  %427 = vst [vmem:[%s301 + $0xf8] sm:%s293] %v426
                  %v428 = vld [vmem:[%s300 + $0x1dc] sm:%s293]
                  %429 = vst [vmem:[%s301 + $0xfc] sm:%s293] %v428
                $region63: #{efficient3dcnn_forward.2} parent=50 // loop_footer
                  %s299 = sadd.s32 1, %s295
                $region64: #{efficient3dcnn_forward.2} parent=50 // loop_footer_branch
                  %294 = sbr.rel target = $region60
                $region65: #{efficient3dcnn_forward.2} parent=50 // loop_exit
                  _
              $region51: #{efficient3dcnn_forward.2} parent=35 // pred_fallthru
                _
            $region36: #{efficient3dcnn_forward.2} parent=31 // pred_fallthru
              _
            // Predicated region
            $region37: #{efficient3dcnn_forward.2} parent=31 // pred_check
              _
            $region38: #{efficient3dcnn_forward.2} parent=31 // pred_check_branch
              %143 = sbr.rel (0) target = $region40
            $region39: #{efficient3dcnn_forward.2} parent=31 // pred_region
              %s145 = ssub.s32 16, 1
              loop: start=0, step=1, limit=1
              $region41: #{efficient3dcnn_forward.2} parent=39 // loop_pre_header
                _
              $region42: #{efficient3dcnn_forward.2} parent=39 // loop_header
                %s147 = sphi 0, %s151
                %p148 = scmp.ge.s32.totalorder %s147, 1
                %s152 = sphi %s137, %s137
                %s153 = sphi %s134, %s134
              $region43: #{efficient3dcnn_forward.2} parent=39 // loop_header_branch
                %150 = sbr.rel (%p148) target = $region47
              $region44: #{efficient3dcnn_forward.2} parent=39 // loop_body
                %v154 = vld [vmem:[%s152] sm:%s145]
                %155 = vst [vmem:[%s153] sm:%s145] %v154
                %v156 = vld [vmem:[%s152 + $0x4] sm:%s145]
                %157 = vst [vmem:[%s153 + $0x4] sm:%s145] %v156
                %v158 = vld [vmem:[%s152 + $0x8] sm:%s145]
                %159 = vst [vmem:[%s153 + $0x8] sm:%s145] %v158
                %v160 = vld [vmem:[%s152 + $0xc] sm:%s145]
                %161 = vst [vmem:[%s153 + $0xc] sm:%s145] %v160
                %v162 = vld [vmem:[%s152 + $0x10] sm:%s145]
                %163 = vst [vmem:[%s153 + $0x10] sm:%s145] %v162
                %v164 = vld [vmem:[%s152 + $0x14] sm:%s145]
                %165 = vst [vmem:[%s153 + $0x14] sm:%s145] %v164
                %v166 = vld [vmem:[%s152 + $0x18] sm:%s145]
                %167 = vst [vmem:[%s153 + $0x18] sm:%s145] %v166
                %v168 = vld [vmem:[%s152 + $0x1c] sm:%s145]
                %169 = vst [vmem:[%s153 + $0x1c] sm:%s145] %v168
                %v170 = vld [vmem:[%s152 + $0x40] sm:%s145]
                %171 = vst [vmem:[%s153 + $0x20] sm:%s145] %v170
                %v172 = vld [vmem:[%s152 + $0x44] sm:%s145]
                %173 = vst [vmem:[%s153 + $0x24] sm:%s145] %v172
                %v174 = vld [vmem:[%s152 + $0x48] sm:%s145]
                %175 = vst [vmem:[%s153 + $0x28] sm:%s145] %v174
                %v176 = vld [vmem:[%s152 + $0x4c] sm:%s145]
                %177 = vst [vmem:[%s153 + $0x2c] sm:%s145] %v176
                %v178 = vld [vmem:[%s152 + $0x50] sm:%s145]
                %179 = vst [vmem:[%s153 + $0x30] sm:%s145] %v178
                %v180 = vld [vmem:[%s152 + $0x54] sm:%s145]
                %181 = vst [vmem:[%s153 + $0x34] sm:%s145] %v180
                %v182 = vld [vmem:[%s152 + $0x58] sm:%s145]
                %183 = vst [vmem:[%s153 + $0x38] sm:%s145] %v182
                %v184 = vld [vmem:[%s152 + $0x5c] sm:%s145]
                %185 = vst [vmem:[%s153 + $0x3c] sm:%s145] %v184
                %v186 = vld [vmem:[%s152 + $0x80] sm:%s145]
                %187 = vst [vmem:[%s153 + $0x40] sm:%s145] %v186
                %v188 = vld [vmem:[%s152 + $0x84] sm:%s145]
                %189 = vst [vmem:[%s153 + $0x44] sm:%s145] %v188
                %v190 = vld [vmem:[%s152 + $0x88] sm:%s145]
                %191 = vst [vmem:[%s153 + $0x48] sm:%s145] %v190
                %v192 = vld [vmem:[%s152 + $0x8c] sm:%s145]
                %193 = vst [vmem:[%s153 + $0x4c] sm:%s145] %v192
                %v194 = vld [vmem:[%s152 + $0x90] sm:%s145]
                %195 = vst [vmem:[%s153 + $0x50] sm:%s145] %v194
                %v196 = vld [vmem:[%s152 + $0x94] sm:%s145]
                %197 = vst [vmem:[%s153 + $0x54] sm:%s145] %v196
                %v198 = vld [vmem:[%s152 + $0x98] sm:%s145]
                %199 = vst [vmem:[%s153 + $0x58] sm:%s145] %v198
                %v200 = vld [vmem:[%s152 + $0x9c] sm:%s145]
                %201 = vst [vmem:[%s153 + $0x5c] sm:%s145] %v200
                %v202 = vld [vmem:[%s152 + $0xc0] sm:%s145]
                %203 = vst [vmem:[%s153 + $0x60] sm:%s145] %v202
                %v204 = vld [vmem:[%s152 + $0xc4] sm:%s145]
                %205 = vst [vmem:[%s153 + $0x64] sm:%s145] %v204
                %v206 = vld [vmem:[%s152 + $0xc8] sm:%s145]
                %207 = vst [vmem:[%s153 + $0x68] sm:%s145] %v206
                %v208 = vld [vmem:[%s152 + $0xcc] sm:%s145]
                %209 = vst [vmem:[%s153 + $0x6c] sm:%s145] %v208
                %v210 = vld [vmem:[%s152 + $0xd0] sm:%s145]
                %211 = vst [vmem:[%s153 + $0x70] sm:%s145] %v210
                %v212 = vld [vmem:[%s152 + $0xd4] sm:%s145]
                %213 = vst [vmem:[%s153 + $0x74] sm:%s145] %v212
                %v214 = vld [vmem:[%s152 + $0xd8] sm:%s145]
                %215 = vst [vmem:[%s153 + $0x78] sm:%s145] %v214
                %v216 = vld [vmem:[%s152 + $0xdc] sm:%s145]
                %217 = vst [vmem:[%s153 + $0x7c] sm:%s145] %v216
                %v218 = vld [vmem:[%s152 + $0x100] sm:%s145]
                %219 = vst [vmem:[%s153 + $0x80] sm:%s145] %v218
                %v220 = vld [vmem:[%s152 + $0x104] sm:%s145]
                %221 = vst [vmem:[%s153 + $0x84] sm:%s145] %v220
                %v222 = vld [vmem:[%s152 + $0x108] sm:%s145]
                %223 = vst [vmem:[%s153 + $0x88] sm:%s145] %v222
                %v224 = vld [vmem:[%s152 + $0x10c] sm:%s145]
                %225 = vst [vmem:[%s153 + $0x8c] sm:%s145] %v224
                %v226 = vld [vmem:[%s152 + $0x110] sm:%s145]
                %227 = vst [vmem:[%s153 + $0x90] sm:%s145] %v226
                %v228 = vld [vmem:[%s152 + $0x114] sm:%s145]
                %229 = vst [vmem:[%s153 + $0x94] sm:%s145] %v228
                %v230 = vld [vmem:[%s152 + $0x118] sm:%s145]
                %231 = vst [vmem:[%s153 + $0x98] sm:%s145] %v230
                %v232 = vld [vmem:[%s152 + $0x11c] sm:%s145]
                %233 = vst [vmem:[%s153 + $0x9c] sm:%s145] %v232
                %v234 = vld [vmem:[%s152 + $0x140] sm:%s145]
                %235 = vst [vmem:[%s153 + $0xa0] sm:%s145] %v234
                %v236 = vld [vmem:[%s152 + $0x144] sm:%s145]
                %237 = vst [vmem:[%s153 + $0xa4] sm:%s145] %v236
                %v238 = vld [vmem:[%s152 + $0x148] sm:%s145]
                %239 = vst [vmem:[%s153 + $0xa8] sm:%s145] %v238
                %v240 = vld [vmem:[%s152 + $0x14c] sm:%s145]
                %241 = vst [vmem:[%s153 + $0xac] sm:%s145] %v240
                %v242 = vld [vmem:[%s152 + $0x150] sm:%s145]
                %243 = vst [vmem:[%s153 + $0xb0] sm:%s145] %v242
                %v244 = vld [vmem:[%s152 + $0x154] sm:%s145]
                %245 = vst [vmem:[%s153 + $0xb4] sm:%s145] %v244
                %v246 = vld [vmem:[%s152 + $0x158] sm:%s145]
                %247 = vst [vmem:[%s153 + $0xb8] sm:%s145] %v246
                %v248 = vld [vmem:[%s152 + $0x15c] sm:%s145]
                %249 = vst [vmem:[%s153 + $0xbc] sm:%s145] %v248
                %v250 = vld [vmem:[%s152 + $0x180] sm:%s145]
                %251 = vst [vmem:[%s153 + $0xc0] sm:%s145] %v250
                %v252 = vld [vmem:[%s152 + $0x184] sm:%s145]
                %253 = vst [vmem:[%s153 + $0xc4] sm:%s145] %v252
                %v254 = vld [vmem:[%s152 + $0x188] sm:%s145]
                %255 = vst [vmem:[%s153 + $0xc8] sm:%s145] %v254
                %v256 = vld [vmem:[%s152 + $0x18c] sm:%s145]
                %257 = vst [vmem:[%s153 + $0xcc] sm:%s145] %v256
                %v258 = vld [vmem:[%s152 + $0x190] sm:%s145]
                %259 = vst [vmem:[%s153 + $0xd0] sm:%s145] %v258
                %v260 = vld [vmem:[%s152 + $0x194] sm:%s145]
                %261 = vst [vmem:[%s153 + $0xd4] sm:%s145] %v260
                %v262 = vld [vmem:[%s152 + $0x198] sm:%s145]
                %263 = vst [vmem:[%s153 + $0xd8] sm:%s145] %v262
                %v264 = vld [vmem:[%s152 + $0x19c] sm:%s145]
                %265 = vst [vmem:[%s153 + $0xdc] sm:%s145] %v264
                %v266 = vld [vmem:[%s152 + $0x1c0] sm:%s145]
                %267 = vst [vmem:[%s153 + $0xe0] sm:%s145] %v266
                %v268 = vld [vmem:[%s152 + $0x1c4] sm:%s145]
                %269 = vst [vmem:[%s153 + $0xe4] sm:%s145] %v268
                %v270 = vld [vmem:[%s152 + $0x1c8] sm:%s145]
                %271 = vst [vmem:[%s153 + $0xe8] sm:%s145] %v270
                %v272 = vld [vmem:[%s152 + $0x1cc] sm:%s145]
                %273 = vst [vmem:[%s153 + $0xec] sm:%s145] %v272
                %v274 = vld [vmem:[%s152 + $0x1d0] sm:%s145]
                %275 = vst [vmem:[%s153 + $0xf0] sm:%s145] %v274
                %v276 = vld [vmem:[%s152 + $0x1d4] sm:%s145]
                %277 = vst [vmem:[%s153 + $0xf4] sm:%s145] %v276
                %v278 = vld [vmem:[%s152 + $0x1d8] sm:%s145]
                %279 = vst [vmem:[%s153 + $0xf8] sm:%s145] %v278
                %v280 = vld [vmem:[%s152 + $0x1dc] sm:%s145]
                %281 = vst [vmem:[%s153 + $0xfc] sm:%s145] %v280
              $region45: #{efficient3dcnn_forward.2} parent=39 // loop_footer
                %s151 = sadd.s32 1, %s147
              $region46: #{efficient3dcnn_forward.2} parent=39 // loop_footer_branch
                %146 = sbr.rel target = $region42
              $region47: #{efficient3dcnn_forward.2} parent=39 // loop_exit
                _
            $region40: #{efficient3dcnn_forward.2} parent=31 // pred_fallthru
              _
          $region32: #{efficient3dcnn_forward.2} parent=27 // pred_fallthru
            _
          %430 = vnop
        $region28: #{efficient3dcnn_forward.2} parent=23 // pred_fallthru
          _
      $region24: #{efficient3dcnn_forward.2} parent=5 // pred_fallthru
        _
      %p431 = scmp.le.s32.totalorder 1, %s9
      %p432 = scmp.lt.s32.totalorder %s9, 3
      %p433 = pnand %p431, %p432
      %p434 = pneg %p433
      // Predicated region
      $region66: #{efficient3dcnn_forward.2} parent=5 // pred_check
        _
      $region67: #{efficient3dcnn_forward.2} parent=5 // pred_check_branch
        %436 = sbr.rel (%p433) target = $region69
      $region68: #{efficient3dcnn_forward.2} parent=5 // pred_region
        %s437 = ssub.s32 %s9, 1
        %s438 = sand.u32 %s22, 1
        %s439 = sand.u32 %s22, 1
        %s440 = smul.addr %s439, 256
        %s441 = scalar_lea.vmem [#allocation2], %s440
        // Predicated region
        $region70: #{efficient3dcnn_forward.2} parent=68 // pred_check
          %p442 = pneg %p35
        $region71: #{efficient3dcnn_forward.2} parent=68 // pred_check_branch
          %444 = sbr.rel (%p442) target = $region73
        $region72: #{efficient3dcnn_forward.2} parent=68 // pred_region
          _
        $region73: #{efficient3dcnn_forward.2} parent=68 // pred_fallthru
          _
        %s445 = sand.u32 %s22, 1
        %s446 = sand.u32 %s22, 1
        %s447 = smul.addr %s446, 256
        %s448 = scalar_lea.vmem [#allocation2], %s447
        %p449 = pneg %p35
        %p450 = pneg %p32
        %p451 = pneg %p56
        %p452 = pneg %p53
        %p453 = pneg %p77
        %p454 = pneg %p74
        %p455 = pneg %p103
        %p456 = pneg %p100
        %s457 = smul.u32 8, %s14
        %p458 = scmp.lt.s32.totalorder %s457, 15
        %s459 = scalar_select %p458, %s457, 15
        %s460 = smul.addr %s459, 8
        %s461 = scalar_lea.vmem %s3, %s460
        %s462 = smul.u32 8, %s14
        %s463 = smul.u32 8, %s14
        %p464 = scmp.lt.s32.totalorder %s463, 15
        %s465 = scalar_select %p464, %s463, 15
        %s466 = smul.addr %s465, 8
        %s467 = scalar_lea.vmem %s3, %s466
        %s468 = smul.u32 8, %s14
        %v469 = vld [vmem:[%s1] sm:$0xf]
        %v470 = vld [vmem:[%s1 + $0x4] sm:$0xf]
        %v471 = vld [vmem:[%s1 + $0x8] sm:$0xf]
        %v472 = vld [vmem:[%s1 + $0xc] sm:$0xf]
        %v473 = vld [vmem:[%s1 + $0x10] sm:$0xf]
        %v474 = vld [vmem:[%s1 + $0x14] sm:$0xf]
        %v475 = vld [vmem:[%s1 + $0x18] sm:$0xf]
        %v476 = vld [vmem:[%s1 + $0x1c] sm:$0xf]
        %v477 = vld [vmem:[%s1 + $0x20] sm:$0xf]
        %v478 = vld [vmem:[%s1 + $0x24] sm:$0xf]
        %v479 = vld [vmem:[%s1 + $0x28] sm:$0xf]
        %v480 = vld [vmem:[%s1 + $0x2c] sm:$0xf]
        %v481 = vld [vmem:[%s1 + $0x30] sm:$0xf]
        %v482 = vld [vmem:[%s1 + $0x34] sm:$0xf]
        %v483 = vld [vmem:[%s1 + $0x38] sm:$0xf]
        %v484 = vld [vmem:[%s1 + $0x3c] sm:$0xf]
        %v485 = vld [vmem:[%s441] sm:$0xf]
        %v486 = vld [vmem:[%s441 + $0x4] sm:$0xf]
        %v487 = vld [vmem:[%s441 + $0x8] sm:$0xf]
        %v488 = vld [vmem:[%s441 + $0xc] sm:$0xf]
        %v489 = vld [vmem:[%s441 + $0x10] sm:$0xf]
        %v490 = vld [vmem:[%s441 + $0x14] sm:$0xf]
        %v491 = vld [vmem:[%s441 + $0x18] sm:$0xf]
        %v492 = vld [vmem:[%s441 + $0x1c] sm:$0xf]
        %v501 = vunpack.c.l.b16 %v485
        %v502 = vunpack.c.l.b16 %v486
        %v503 = vunpack.c.l.b16 %v487
        %v504 = vunpack.c.l.b16 %v488
        %v505 = vunpack.c.l.b16 %v489
        %v506 = vunpack.c.l.b16 %v490
        %v507 = vunpack.c.l.b16 %v491
        %v508 = vunpack.c.l.b16 %v492
        %v509 = vpack.c.b16 %v502, %v501
        %v510 = vpack.c.b16 %v504, %v503
        %v511 = vpack.c.b16 %v506, %v505
        %v512 = vpack.c.b16 %v508, %v507
        %v533 = vunpack.c.l.b16 %v469
        %v534 = vunpack.c.l.b16 %v470
        %v535 = vunpack.c.l.b16 %v471
        %v536 = vunpack.c.l.b16 %v472
        %v537 = vunpack.c.l.b16 %v473
        %v538 = vunpack.c.l.b16 %v474
        %v539 = vunpack.c.l.b16 %v475
        %v540 = vunpack.c.l.b16 %v476
        %v541 = vunpack.c.l.b16 %v477
        %v542 = vunpack.c.l.b16 %v478
        %v543 = vunpack.c.l.b16 %v479
        %v544 = vunpack.c.l.b16 %v480
        %v545 = vunpack.c.l.b16 %v481
        %v546 = vunpack.c.l.b16 %v482
        %v547 = vunpack.c.l.b16 %v483
        %v548 = vunpack.c.l.b16 %v484
        %v549 = vpack.c.b16 %v534, %v533
        %v550 = vpack.c.b16 %v536, %v535
        %v551 = vpack.c.b16 %v538, %v537
        %v552 = vpack.c.b16 %v540, %v539
        %v553 = vpack.c.b16 %v542, %v541
        %v554 = vpack.c.b16 %v544, %v543
        %v555 = vpack.c.b16 %v546, %v545
        %v556 = vpack.c.b16 %v548, %v547
        %565 = vmatpush.bf16.msra.mxu0 %v556
        %566 = vmatpush.bf16.msra.mxu0 %v555
        %567 = vmatpush.bf16.msra.mxu0 %v554
        %568 = vmatpush.bf16.msra.mxu0 %v553
        %569 = vmatpush.bf16.msra.mxu0 %v552
        %570 = vmatpush.bf16.msra.mxu0 %v551
        %571 = vmatpush.bf16.msra.mxu0 %v550
        %572 = vmatpush.bf16.msra.mxu0 %v549
        %573 = vmatmul.bf16.gmra.mxu0 %v509
        %v574 = vpop.f32.mrf.mxu0
        %v575 = vadd.f32 0.0, %v574
        %v576 = vpop.f32.mrf.mxu0
        %v577 = vadd.f32 0.0, %v576
        %578 = vmatmul.bf16.gmra.mxu0 %v510
        %v579 = vpop.f32.mrf.mxu0
        %v580 = vadd.f32 0.0, %v579
        %v581 = vpop.f32.mrf.mxu0
        %v582 = vadd.f32 0.0, %v581
        %583 = vmatmul.bf16.gmra.mxu0 %v511
        %v584 = vpop.f32.mrf.mxu0
        %v585 = vadd.f32 0.0, %v584
        %v586 = vpop.f32.mrf.mxu0
        %v587 = vadd.f32 0.0, %v586
        %588 = vmatmul.bf16.gmra.mxu0 %v512
        %v589 = vpop.f32.mrf.mxu0
        %v590 = vadd.f32 0.0, %v589
        %v591 = vpop.f32.mrf.mxu0
        %v592 = vadd.f32 0.0, %v591
        %593 = vdwg.mxu0
        %s594 = scalar_lea.vmem %s441, 32 [#allocation2]
        %v595 = vld [vmem:[%s594] sm:$0xf]
        %v596 = vld [vmem:[%s594 + $0x4] sm:$0xf]
        %v597 = vld [vmem:[%s594 + $0x8] sm:$0xf]
        %v598 = vld [vmem:[%s594 + $0xc] sm:$0xf]
        %v599 = vld [vmem:[%s594 + $0x10] sm:$0xf]
        %v600 = vld [vmem:[%s594 + $0x14] sm:$0xf]
        %v601 = vld [vmem:[%s594 + $0x18] sm:$0xf]
        %v602 = vld [vmem:[%s594 + $0x1c] sm:$0xf]
        %v611 = vunpack.c.l.b16 %v595
        %v612 = vunpack.c.l.b16 %v596
        %v613 = vunpack.c.l.b16 %v597
        %v614 = vunpack.c.l.b16 %v598
        %v615 = vunpack.c.l.b16 %v599
        %v616 = vunpack.c.l.b16 %v600
        %v617 = vunpack.c.l.b16 %v601
        %v618 = vunpack.c.l.b16 %v602
        %v619 = vpack.c.b16 %v612, %v611
        %v620 = vpack.c.b16 %v614, %v613
        %v621 = vpack.c.b16 %v616, %v615
        %v622 = vpack.c.b16 %v618, %v617
        %627 = vmatpush.bf16.msra.mxu0 %v556
        %628 = vmatpush.bf16.msra.mxu0 %v555
        %629 = vmatpush.bf16.msra.mxu0 %v554
        %630 = vmatpush.bf16.msra.mxu0 %v553
        %631 = vmatpush.bf16.msra.mxu0 %v552
        %632 = vmatpush.bf16.msra.mxu0 %v551
        %633 = vmatpush.bf16.msra.mxu0 %v550
        %634 = vmatpush.bf16.msra.mxu0 %v549
        %635 = vmatmul.bf16.gmra.mxu0 %v619
        %v636 = vpop.f32.mrf.mxu0
        %v637 = vadd.f32 0.0, %v636
        %v638 = vpop.f32.mrf.mxu0
        %v639 = vadd.f32 0.0, %v638
        %640 = vmatmul.bf16.gmra.mxu0 %v620
        %v641 = vpop.f32.mrf.mxu0
        %v642 = vadd.f32 0.0, %v641
        %v643 = vpop.f32.mrf.mxu0
        %v644 = vadd.f32 0.0, %v643
        %645 = vmatmul.bf16.gmra.mxu0 %v621
        %v646 = vpop.f32.mrf.mxu0
        %v647 = vadd.f32 0.0, %v646
        %v648 = vpop.f32.mrf.mxu0
        %v649 = vadd.f32 0.0, %v648
        %650 = vmatmul.bf16.gmra.mxu0 %v622
        %v651 = vpop.f32.mrf.mxu0
        %v652 = vadd.f32 0.0, %v651
        %v653 = vpop.f32.mrf.mxu0
        %v654 = vadd.f32 0.0, %v653
        %655 = vdwg.mxu0
        %v656 = vmax.f32 %v575, %v637
        %v657 = vmax.f32 %v577, %v639
        %v658 = vmax.f32 %v580, %v642
        %v659 = vmax.f32 %v582, %v644
        %v660 = vmax.f32 %v585, %v647
        %v661 = vmax.f32 %v587, %v649
        %v662 = vmax.f32 %v590, %v652
        %v663 = vmax.f32 %v592, %v654
        %s664 = scalar_lea.vmem %s441, 64 [#allocation2]
        %v665 = vld [vmem:[%s664] sm:$0xf]
        %v666 = vld [vmem:[%s664 + $0x4] sm:$0xf]
        %v667 = vld [vmem:[%s664 + $0x8] sm:$0xf]
        %v668 = vld [vmem:[%s664 + $0xc] sm:$0xf]
        %v669 = vld [vmem:[%s664 + $0x10] sm:$0xf]
        %v670 = vld [vmem:[%s664 + $0x14] sm:$0xf]
        %v671 = vld [vmem:[%s664 + $0x18] sm:$0xf]
        %v672 = vld [vmem:[%s664 + $0x1c] sm:$0xf]
        %v681 = vunpack.c.l.b16 %v665
        %v682 = vunpack.c.l.b16 %v666
        %v683 = vunpack.c.l.b16 %v667
        %v684 = vunpack.c.l.b16 %v668
        %v685 = vunpack.c.l.b16 %v669
        %v686 = vunpack.c.l.b16 %v670
        %v687 = vunpack.c.l.b16 %v671
        %v688 = vunpack.c.l.b16 %v672
        %v689 = vpack.c.b16 %v682, %v681
        %v690 = vpack.c.b16 %v684, %v683
        %v691 = vpack.c.b16 %v686, %v685
        %v692 = vpack.c.b16 %v688, %v687
        %697 = vmatpush.bf16.msra.mxu0 %v556
        %698 = vmatpush.bf16.msra.mxu0 %v555
        %699 = vmatpush.bf16.msra.mxu0 %v554
        %700 = vmatpush.bf16.msra.mxu0 %v553
        %701 = vmatpush.bf16.msra.mxu0 %v552
        %702 = vmatpush.bf16.msra.mxu0 %v551
        %703 = vmatpush.bf16.msra.mxu0 %v550
        %704 = vmatpush.bf16.msra.mxu0 %v549
        %705 = vmatmul.bf16.gmra.mxu0 %v689
        %v706 = vpop.f32.mrf.mxu0
        %v707 = vadd.f32 0.0, %v706
        %v708 = vpop.f32.mrf.mxu0
        %v709 = vadd.f32 0.0, %v708
        %710 = vmatmul.bf16.gmra.mxu0 %v690
        %v711 = vpop.f32.mrf.mxu0
        %v712 = vadd.f32 0.0, %v711
        %v713 = vpop.f32.mrf.mxu0
        %v714 = vadd.f32 0.0, %v713
        %715 = vmatmul.bf16.gmra.mxu0 %v691
        %v716 = vpop.f32.mrf.mxu0
        %v717 = vadd.f32 0.0, %v716
        %v718 = vpop.f32.mrf.mxu0
        %v719 = vadd.f32 0.0, %v718
        %720 = vmatmul.bf16.gmra.mxu0 %v692
        %v721 = vpop.f32.mrf.mxu0
        %v722 = vadd.f32 0.0, %v721
        %v723 = vpop.f32.mrf.mxu0
        %v724 = vadd.f32 0.0, %v723
        %725 = vdwg.mxu0
        %v726 = vmax.f32 %v656, %v707
        %v727 = vmax.f32 %v657, %v709
        %v728 = vmax.f32 %v658, %v712
        %v729 = vmax.f32 %v659, %v714
        %v730 = vmax.f32 %v660, %v717
        %v731 = vmax.f32 %v661, %v719
        %v732 = vmax.f32 %v662, %v722
        %v733 = vmax.f32 %v663, %v724
        %s734 = scalar_lea.vmem %s441, 96 [#allocation2]
        %v735 = vld [vmem:[%s734] sm:$0xf]
        %v736 = vld [vmem:[%s734 + $0x4] sm:$0xf]
        %v737 = vld [vmem:[%s734 + $0x8] sm:$0xf]
        %v738 = vld [vmem:[%s734 + $0xc] sm:$0xf]
        %v739 = vld [vmem:[%s734 + $0x10] sm:$0xf]
        %v740 = vld [vmem:[%s734 + $0x14] sm:$0xf]
        %v741 = vld [vmem:[%s734 + $0x18] sm:$0xf]
        %v742 = vld [vmem:[%s734 + $0x1c] sm:$0xf]
        %v751 = vunpack.c.l.b16 %v735
        %v752 = vunpack.c.l.b16 %v736
        %v753 = vunpack.c.l.b16 %v737
        %v754 = vunpack.c.l.b16 %v738
        %v755 = vunpack.c.l.b16 %v739
        %v756 = vunpack.c.l.b16 %v740
        %v757 = vunpack.c.l.b16 %v741
        %v758 = vunpack.c.l.b16 %v742
        %v759 = vpack.c.b16 %v752, %v751
        %v760 = vpack.c.b16 %v754, %v753
        %v761 = vpack.c.b16 %v756, %v755
        %v762 = vpack.c.b16 %v758, %v757
        %767 = vmatpush.bf16.msra.mxu0 %v556
        %768 = vmatpush.bf16.msra.mxu0 %v555
        %769 = vmatpush.bf16.msra.mxu0 %v554
        %770 = vmatpush.bf16.msra.mxu0 %v553
        %771 = vmatpush.bf16.msra.mxu0 %v552
        %772 = vmatpush.bf16.msra.mxu0 %v551
        %773 = vmatpush.bf16.msra.mxu0 %v550
        %774 = vmatpush.bf16.msra.mxu0 %v549
        %775 = vmatmul.bf16.gmra.mxu0 %v759
        %v776 = vpop.f32.mrf.mxu0
        %v777 = vadd.f32 0.0, %v776
        %v778 = vpop.f32.mrf.mxu0
        %v779 = vadd.f32 0.0, %v778
        %780 = vmatmul.bf16.gmra.mxu0 %v760
        %v781 = vpop.f32.mrf.mxu0
        %v782 = vadd.f32 0.0, %v781
        %v783 = vpop.f32.mrf.mxu0
        %v784 = vadd.f32 0.0, %v783
        %785 = vmatmul.bf16.gmra.mxu0 %v761
        %v786 = vpop.f32.mrf.mxu0
        %v787 = vadd.f32 0.0, %v786
        %v788 = vpop.f32.mrf.mxu0
        %v789 = vadd.f32 0.0, %v788
        %790 = vmatmul.bf16.gmra.mxu0 %v762
        %v791 = vpop.f32.mrf.mxu0
        %v792 = vadd.f32 0.0, %v791
        %v793 = vpop.f32.mrf.mxu0
        %v794 = vadd.f32 0.0, %v793
        %795 = vdwg.mxu0
        %v796 = vmax.f32 %v726, %v777
        %v797 = vmax.f32 %v727, %v779
        %v798 = vmax.f32 %v728, %v782
        %v799 = vmax.f32 %v729, %v784
        %v800 = vmax.f32 %v730, %v787
        %v801 = vmax.f32 %v731, %v789
        %v802 = vmax.f32 %v732, %v792
        %v803 = vmax.f32 %v733, %v794
        %s804 = scalar_lea.vmem %s441, 128 [#allocation2]
        %v805 = vld [vmem:[%s804] sm:$0xf]
        %v806 = vld [vmem:[%s804 + $0x4] sm:$0xf]
        %v807 = vld [vmem:[%s804 + $0x8] sm:$0xf]
        %v808 = vld [vmem:[%s804 + $0xc] sm:$0xf]
        %v809 = vld [vmem:[%s804 + $0x10] sm:$0xf]
        %v810 = vld [vmem:[%s804 + $0x14] sm:$0xf]
        %v811 = vld [vmem:[%s804 + $0x18] sm:$0xf]
        %v812 = vld [vmem:[%s804 + $0x1c] sm:$0xf]
        %v821 = vunpack.c.l.b16 %v805
        %v822 = vunpack.c.l.b16 %v806
        %v823 = vunpack.c.l.b16 %v807
        %v824 = vunpack.c.l.b16 %v808
        %v825 = vunpack.c.l.b16 %v809
        %v826 = vunpack.c.l.b16 %v810
        %v827 = vunpack.c.l.b16 %v811
        %v828 = vunpack.c.l.b16 %v812
        %v829 = vpack.c.b16 %v822, %v821
        %v830 = vpack.c.b16 %v824, %v823
        %v831 = vpack.c.b16 %v826, %v825
        %v832 = vpack.c.b16 %v828, %v827
        %837 = vmatpush.bf16.msra.mxu0 %v556
        %838 = vmatpush.bf16.msra.mxu0 %v555
        %839 = vmatpush.bf16.msra.mxu0 %v554
        %840 = vmatpush.bf16.msra.mxu0 %v553
        %841 = vmatpush.bf16.msra.mxu0 %v552
        %842 = vmatpush.bf16.msra.mxu0 %v551
        %843 = vmatpush.bf16.msra.mxu0 %v550
        %844 = vmatpush.bf16.msra.mxu0 %v549
        %845 = vmatmul.bf16.gmra.mxu0 %v829
        %v846 = vpop.f32.mrf.mxu0
        %v847 = vadd.f32 0.0, %v846
        %v848 = vpop.f32.mrf.mxu0
        %v849 = vadd.f32 0.0, %v848
        %850 = vmatmul.bf16.gmra.mxu0 %v830
        %v851 = vpop.f32.mrf.mxu0
        %v852 = vadd.f32 0.0, %v851
        %v853 = vpop.f32.mrf.mxu0
        %v854 = vadd.f32 0.0, %v853
        %855 = vmatmul.bf16.gmra.mxu0 %v831
        %v856 = vpop.f32.mrf.mxu0
        %v857 = vadd.f32 0.0, %v856
        %v858 = vpop.f32.mrf.mxu0
        %v859 = vadd.f32 0.0, %v858
        %860 = vmatmul.bf16.gmra.mxu0 %v832
        %v861 = vpop.f32.mrf.mxu0
        %v862 = vadd.f32 0.0, %v861
        %v863 = vpop.f32.mrf.mxu0
        %v864 = vadd.f32 0.0, %v863
        %865 = vdwg.mxu0
        %v866 = vmax.f32 %v796, %v847
        %v867 = vmax.f32 %v797, %v849
        %v868 = vmax.f32 %v798, %v852
        %v869 = vmax.f32 %v799, %v854
        %v870 = vmax.f32 %v800, %v857
        %v871 = vmax.f32 %v801, %v859
        %v872 = vmax.f32 %v802, %v862
        %v873 = vmax.f32 %v803, %v864
        %s874 = scalar_lea.vmem %s441, 160 [#allocation2]
        %v875 = vld [vmem:[%s874] sm:$0xf]
        %v876 = vld [vmem:[%s874 + $0x4] sm:$0xf]
        %v877 = vld [vmem:[%s874 + $0x8] sm:$0xf]
        %v878 = vld [vmem:[%s874 + $0xc] sm:$0xf]
        %v879 = vld [vmem:[%s874 + $0x10] sm:$0xf]
        %v880 = vld [vmem:[%s874 + $0x14] sm:$0xf]
        %v881 = vld [vmem:[%s874 + $0x18] sm:$0xf]
        %v882 = vld [vmem:[%s874 + $0x1c] sm:$0xf]
        %v891 = vunpack.c.l.b16 %v875
        %v892 = vunpack.c.l.b16 %v876
        %v893 = vunpack.c.l.b16 %v877
        %v894 = vunpack.c.l.b16 %v878
        %v895 = vunpack.c.l.b16 %v879
        %v896 = vunpack.c.l.b16 %v880
        %v897 = vunpack.c.l.b16 %v881
        %v898 = vunpack.c.l.b16 %v882
        %v899 = vpack.c.b16 %v892, %v891
        %v900 = vpack.c.b16 %v894, %v893
        %v901 = vpack.c.b16 %v896, %v895
        %v902 = vpack.c.b16 %v898, %v897
        %907 = vmatpush.bf16.msra.mxu0 %v556
        %908 = vmatpush.bf16.msra.mxu0 %v555
        %909 = vmatpush.bf16.msra.mxu0 %v554
        %910 = vmatpush.bf16.msra.mxu0 %v553
        %911 = vmatpush.bf16.msra.mxu0 %v552
        %912 = vmatpush.bf16.msra.mxu0 %v551
        %913 = vmatpush.bf16.msra.mxu0 %v550
        %914 = vmatpush.bf16.msra.mxu0 %v549
        %915 = vmatmul.bf16.gmra.mxu0 %v899
        %v916 = vpop.f32.mrf.mxu0
        %v917 = vadd.f32 0.0, %v916
        %v918 = vpop.f32.mrf.mxu0
        %v919 = vadd.f32 0.0, %v918
        %920 = vmatmul.bf16.gmra.mxu0 %v900
        %v921 = vpop.f32.mrf.mxu0
        %v922 = vadd.f32 0.0, %v921
        %v923 = vpop.f32.mrf.mxu0
        %v924 = vadd.f32 0.0, %v923
        %925 = vmatmul.bf16.gmra.mxu0 %v901
        %v926 = vpop.f32.mrf.mxu0
        %v927 = vadd.f32 0.0, %v926
        %v928 = vpop.f32.mrf.mxu0
        %v929 = vadd.f32 0.0, %v928
        %930 = vmatmul.bf16.gmra.mxu0 %v902
        %v931 = vpop.f32.mrf.mxu0
        %v932 = vadd.f32 0.0, %v931
        %v933 = vpop.f32.mrf.mxu0
        %v934 = vadd.f32 0.0, %v933
        %935 = vdwg.mxu0
        %v936 = vmax.f32 %v866, %v917
        %v937 = vmax.f32 %v867, %v919
        %v938 = vmax.f32 %v868, %v922
        %v939 = vmax.f32 %v869, %v924
        %v940 = vmax.f32 %v870, %v927
        %v941 = vmax.f32 %v871, %v929
        %v942 = vmax.f32 %v872, %v932
        %v943 = vmax.f32 %v873, %v934
        %s944 = scalar_lea.vmem %s441, 192 [#allocation2]
        %v945 = vld [vmem:[%s944] sm:$0xf]
        %v946 = vld [vmem:[%s944 + $0x4] sm:$0xf]
        %v947 = vld [vmem:[%s944 + $0x8] sm:$0xf]
        %v948 = vld [vmem:[%s944 + $0xc] sm:$0xf]
        %v949 = vld [vmem:[%s944 + $0x10] sm:$0xf]
        %v950 = vld [vmem:[%s944 + $0x14] sm:$0xf]
        %v951 = vld [vmem:[%s944 + $0x18] sm:$0xf]
        %v952 = vld [vmem:[%s944 + $0x1c] sm:$0xf]
        %v961 = vunpack.c.l.b16 %v945
        %v962 = vunpack.c.l.b16 %v946
        %v963 = vunpack.c.l.b16 %v947
        %v964 = vunpack.c.l.b16 %v948
        %v965 = vunpack.c.l.b16 %v949
        %v966 = vunpack.c.l.b16 %v950
        %v967 = vunpack.c.l.b16 %v951
        %v968 = vunpack.c.l.b16 %v952
        %v969 = vpack.c.b16 %v962, %v961
        %v970 = vpack.c.b16 %v964, %v963
        %v971 = vpack.c.b16 %v966, %v965
        %v972 = vpack.c.b16 %v968, %v967
        %977 = vmatpush.bf16.msra.mxu0 %v556
        %978 = vmatpush.bf16.msra.mxu0 %v555
        %979 = vmatpush.bf16.msra.mxu0 %v554
        %980 = vmatpush.bf16.msra.mxu0 %v553
        %981 = vmatpush.bf16.msra.mxu0 %v552
        %982 = vmatpush.bf16.msra.mxu0 %v551
        %983 = vmatpush.bf16.msra.mxu0 %v550
        %984 = vmatpush.bf16.msra.mxu0 %v549
        %985 = vmatmul.bf16.gmra.mxu0 %v969
        %v986 = vpop.f32.mrf.mxu0
        %v987 = vadd.f32 0.0, %v986
        %v988 = vpop.f32.mrf.mxu0
        %v989 = vadd.f32 0.0, %v988
        %990 = vmatmul.bf16.gmra.mxu0 %v970
        %v991 = vpop.f32.mrf.mxu0
        %v992 = vadd.f32 0.0, %v991
        %v993 = vpop.f32.mrf.mxu0
        %v994 = vadd.f32 0.0, %v993
        %995 = vmatmul.bf16.gmra.mxu0 %v971
        %v996 = vpop.f32.mrf.mxu0
        %v997 = vadd.f32 0.0, %v996
        %v998 = vpop.f32.mrf.mxu0
        %v999 = vadd.f32 0.0, %v998
        %1000 = vmatmul.bf16.gmra.mxu0 %v972
        %v1001 = vpop.f32.mrf.mxu0
        %v1002 = vadd.f32 0.0, %v1001
        %v1003 = vpop.f32.mrf.mxu0
        %v1004 = vadd.f32 0.0, %v1003
        %1005 = vdwg.mxu0
        %v1006 = vmax.f32 %v936, %v987
        %v1007 = vmax.f32 %v937, %v989
        %v1008 = vmax.f32 %v938, %v992
        %v1009 = vmax.f32 %v939, %v994
        %v1010 = vmax.f32 %v940, %v997
        %v1011 = vmax.f32 %v941, %v999
        %v1012 = vmax.f32 %v942, %v1002
        %v1013 = vmax.f32 %v943, %v1004
        %s1014 = scalar_lea.vmem %s441, 224 [#allocation2]
        %v1015 = vld [vmem:[%s1014] sm:$0xf]
        %v1016 = vld [vmem:[%s1014 + $0x4] sm:$0xf]
        %v1017 = vld [vmem:[%s1014 + $0x8] sm:$0xf]
        %v1018 = vld [vmem:[%s1014 + $0xc] sm:$0xf]
        %v1019 = vld [vmem:[%s1014 + $0x10] sm:$0xf]
        %v1020 = vld [vmem:[%s1014 + $0x14] sm:$0xf]
        %v1021 = vld [vmem:[%s1014 + $0x18] sm:$0xf]
        %v1022 = vld [vmem:[%s1014 + $0x1c] sm:$0xf]
        %v1031 = vunpack.c.l.b16 %v1015
        %v1032 = vunpack.c.l.b16 %v1016
        %v1033 = vunpack.c.l.b16 %v1017
        %v1034 = vunpack.c.l.b16 %v1018
        %v1035 = vunpack.c.l.b16 %v1019
        %v1036 = vunpack.c.l.b16 %v1020
        %v1037 = vunpack.c.l.b16 %v1021
        %v1038 = vunpack.c.l.b16 %v1022
        %v1039 = vpack.c.b16 %v1032, %v1031
        %v1040 = vpack.c.b16 %v1034, %v1033
        %v1041 = vpack.c.b16 %v1036, %v1035
        %v1042 = vpack.c.b16 %v1038, %v1037
        %1047 = vmatpush.bf16.msra.mxu0 %v556
        %1048 = vmatpush.bf16.msra.mxu0 %v555
        %1049 = vmatpush.bf16.msra.mxu0 %v554
        %1050 = vmatpush.bf16.msra.mxu0 %v553
        %1051 = vmatpush.bf16.msra.mxu0 %v552
        %1052 = vmatpush.bf16.msra.mxu0 %v551
        %1053 = vmatpush.bf16.msra.mxu0 %v550
        %1054 = vmatpush.bf16.msra.mxu0 %v549
        %1055 = vmatmul.bf16.gmra.mxu0 %v1039
        %v1056 = vpop.f32.mrf.mxu0
        %v1057 = vadd.f32 0.0, %v1056
        %v1058 = vpop.f32.mrf.mxu0
        %v1059 = vadd.f32 0.0, %v1058
        %1060 = vmatmul.bf16.gmra.mxu0 %v1040
        %v1061 = vpop.f32.mrf.mxu0
        %v1062 = vadd.f32 0.0, %v1061
        %v1063 = vpop.f32.mrf.mxu0
        %v1064 = vadd.f32 0.0, %v1063
        %1065 = vmatmul.bf16.gmra.mxu0 %v1041
        %v1066 = vpop.f32.mrf.mxu0
        %v1067 = vadd.f32 0.0, %v1066
        %v1068 = vpop.f32.mrf.mxu0
        %v1069 = vadd.f32 0.0, %v1068
        %1070 = vmatmul.bf16.gmra.mxu0 %v1042
        %v1071 = vpop.f32.mrf.mxu0
        %v1072 = vadd.f32 0.0, %v1071
        %v1073 = vpop.f32.mrf.mxu0
        %v1074 = vadd.f32 0.0, %v1073
        %1075 = vdwg.mxu0
        %v1076 = vmax.f32 %v1006, %v1057
        %v1077 = vmax.f32 %v1007, %v1059
        %v1078 = vmax.f32 %v1008, %v1062
        %v1079 = vmax.f32 %v1009, %v1064
        %v1080 = vmax.f32 %v1010, %v1067
        %v1081 = vmax.f32 %v1011, %v1069
        %v1082 = vmax.f32 %v1012, %v1072
        %v1083 = vmax.f32 %v1013, %v1074
        %v1084 = vld [vmem:[%s2] sm:$0x1]
        %v1086 = vperm.slane %v1084, 0
        %v1088 = vadd.f32 %v1076, %v1086
        %v1089 = vadd.f32 %v1077, %v1086
        %v1090 = vadd.f32 %v1078, %v1086
        %v1091 = vadd.f32 %v1079, %v1086
        %v1092 = vadd.f32 %v1080, %v1086
        %v1093 = vadd.f32 %v1081, %v1086
        %v1094 = vadd.f32 %v1082, %v1086
        %v1095 = vadd.f32 %v1083, %v1086
        %v1096 = vmax.f32 %v1088, 0.0
        %v1097 = vmax.f32 %v1089, 0.0
        %v1098 = vmax.f32 %v1090, 0.0
        %v1099 = vmax.f32 %v1091, 0.0
        %v1100 = vmax.f32 %v1092, 0.0
        %v1101 = vmax.f32 %v1093, 0.0
        %v1102 = vmax.f32 %v1094, 0.0
        %v1103 = vmax.f32 %v1095, 0.0
        %vm1104 = vcmask 261120
        %1105 = vst.msk [vmem:[%s467] sm:$0xff] %vm1104, %v1096
        %1106 = vst.msk [vmem:[%s467 + $0x8] sm:$0xff] %vm1104, %v1097
        %1107 = vst.msk [vmem:[%s467 + $0x10] sm:$0xff] %vm1104, %v1098
        %1108 = vst.msk [vmem:[%s467 + $0x18] sm:$0xff] %vm1104, %v1099
        %1109 = vst.msk [vmem:[%s467 + $0x20] sm:$0xff] %vm1104, %v1100
        %1110 = vst.msk [vmem:[%s467 + $0x28] sm:$0xff] %vm1104, %v1101
        %1111 = vst.msk [vmem:[%s467 + $0x30] sm:$0xff] %vm1104, %v1102
        %1112 = vst.msk [vmem:[%s467 + $0x38] sm:$0xff] %vm1104, %v1103
        %s1113 = smul.u32 8, %s14
        %p1114 = scmp.lt.s32.totalorder %s1113, 15
        %s1115 = scalar_select %p1114, %s1113, 15
        %s1116 = smul.addr %s1115, 8
        %s1117 = scalar_lea.vmem %s3, %s1116
        // Predicated region
        $region74: #{efficient3dcnn_forward.2} parent=68 // pred_check
          %p1118 = pneg %p100
        $region75: #{efficient3dcnn_forward.2} parent=68 // pred_check_branch
          %1120 = sbr.rel (%p1118) target = $region77
        $region76: #{efficient3dcnn_forward.2} parent=68 // pred_region
          %s1121 = smul.u32 8, %s14
        $region77: #{efficient3dcnn_forward.2} parent=68 // pred_fallthru
          _
      $region69: #{efficient3dcnn_forward.2} parent=5 // pred_fallthru
        _
      %p1122 = scmp.le.s32.totalorder 2, %s9
      // Predicated region
      $region78: #{efficient3dcnn_forward.2} parent=5 // pred_check
        %p1123 = pneg %p1122
      $region79: #{efficient3dcnn_forward.2} parent=5 // pred_check_branch
        %1125 = sbr.rel (%p1123) target = $region81
      $region80: #{efficient3dcnn_forward.2} parent=5 // pred_region
        %s1126 = ssub.s32 %s9, 2
        // Predicated region
        $region82: #{efficient3dcnn_forward.2} parent=80 // pred_check
          %p1127 = pneg %p106
        $region83: #{efficient3dcnn_forward.2} parent=80 // pred_check_branch
          %1129 = sbr.rel (%p1127) target = $region85
        $region84: #{efficient3dcnn_forward.2} parent=80 // pred_region
          %s1130 = smul.u32 8, %s15
          %p1131 = scmp.lt.s32.totalorder %s1130, 15
          %s1132 = scalar_select %p1131, %s1130, 15
          %s1133 = smul.addr %s1132, 8
          %s1134 = scalar_lea.vmem %s3, %s1133
        $region85: #{efficient3dcnn_forward.2} parent=80 // pred_fallthru
          _
      $region81: #{efficient3dcnn_forward.2} parent=5 // pred_fallthru
        _
    $region6: #{efficient3dcnn_forward.2} parent=1 // loop_footer
      %s13 = sadd.s32 1, %s9
    $region7: #{efficient3dcnn_forward.2} parent=1 // loop_footer_branch
      %8 = sbr.rel target = $region3
    $region8: #{efficient3dcnn_forward.2} parent=1 // loop_exit
      _

// kernel: efficient3dcnn_forward.3
$region0: #{efficient3dcnn_forward.3}
  #allocation0 [shape = 'u32[]', space=smem, size = 0x4, offset = 0x4, fixed_abs, tag = 'smem constant byte address 0x4 - core index']
  #allocation1 [shape = 'u32[72,128]{1,0:T(1,128)}', space=vmem, size = 0x9000, scoped, tag = 'internal scratch']
  %s0 = inlined_call_operand.vmem [shape: bf16[16,896], index: 0, kind: input, shape index: {}]
  %s1 = inlined_call_operand.vmem [shape: bf16[896,64], index: 1, kind: input, shape index: {}]
  %s2 = inlined_call_operand.vmem [shape: f32[1,64], index: 2, kind: input, shape index: {}]
  %s3 = inlined_call_operand.vmem [shape: f32[2,16], index: 3, kind: input, shape index: {}]
  %s4 = inlined_call_operand.vmem [shape: f32[64,10], index: 4, kind: input, shape index: {}]
  %s5 = inlined_call_operand.vmem [shape: f32[1,10], index: 5, kind: input, shape index: {}]
  %s6 = inlined_call_operand.hbm [shape: f32[2,10], index: 6, kind: output, shape index: {}]
  %s7 = sld [smem:[#allocation0]]
  $region34: #{efficient3dcnn_forward.3} parent=0
    _
  %s9 = ssub.s32 1, %s7
  %s10 = scalar_select 0, %s9, %s7
  $region1: #{efficient3dcnn_forward.3} parent=0
    #allocation2 [shape = 'u8[1024]{0}', space=vmem, size = 0x400, scoped, tag = 'output window, operand 0, single buffered']
    #allocation3 [shape = 's32[1]{0}', space=sflag, size = 0x4, scoped, tag = 'scoped memory for efficient3dcnn_forward.3']
    %11 = vsyncpa [#allocation3], 0
    // Predicated region
    $region2: #{efficient3dcnn_forward.3} parent=1 // pred_check
      _
    $region3: #{efficient3dcnn_forward.3} parent=1 // pred_check_branch
      %13 = sbr.rel (0) target = $region5
    $region4: #{efficient3dcnn_forward.3} parent=1 // pred_region
      _
    $region5: #{efficient3dcnn_forward.3} parent=1 // pred_fallthru
      _
    // Predicated region
    $region6: #{efficient3dcnn_forward.3} parent=1 // pred_check
      _
    $region7: #{efficient3dcnn_forward.3} parent=1 // pred_check_branch
      %15 = sbr.rel (0) target = $region9
    $region8: #{efficient3dcnn_forward.3} parent=1 // pred_region
      _
    $region9: #{efficient3dcnn_forward.3} parent=1 // pred_fallthru
      _
    // Predicated region
    $region10: #{efficient3dcnn_forward.3} parent=1 // pred_check
      _
    $region11: #{efficient3dcnn_forward.3} parent=1 // pred_check_branch
      %17 = sbr.rel (0) target = $region13
    $region12: #{efficient3dcnn_forward.3} parent=1 // pred_region
      _
    $region13: #{efficient3dcnn_forward.3} parent=1 // pred_fallthru
      _
    // Predicated region
    $region14: #{efficient3dcnn_forward.3} parent=1 // pred_check
      _
    $region15: #{efficient3dcnn_forward.3} parent=1 // pred_check_branch
      %19 = sbr.rel (0) target = $region17
    $region16: #{efficient3dcnn_forward.3} parent=1 // pred_region
      _
    $region17: #{efficient3dcnn_forward.3} parent=1 // pred_fallthru
      _
    // Predicated region
    $region18: #{efficient3dcnn_forward.3} parent=1 // pred_check
      _
    $region19: #{efficient3dcnn_forward.3} parent=1 // pred_check_branch
      %21 = sbr.rel (0) target = $region21
    $region20: #{efficient3dcnn_forward.3} parent=1 // pred_region
      _
    $region21: #{efficient3dcnn_forward.3} parent=1 // pred_fallthru
      _
    // Predicated region
    $region22: #{efficient3dcnn_forward.3} parent=1 // pred_check
      _
    $region23: #{efficient3dcnn_forward.3} parent=1 // pred_check_branch
      %23 = sbr.rel (0) target = $region25
    $region24: #{efficient3dcnn_forward.3} parent=1 // pred_region
      _
    $region25: #{efficient3dcnn_forward.3} parent=1 // pred_fallthru
      _
    %v24 = vld [vmem:[%s0] sm:$0xff]
    %v25 = vld [vmem:[%s0 + $0x8] sm:$0xff]
    %v26 = vld [vmem:[%s0 + $0x10] sm:$0xff]
    %v27 = vld [vmem:[%s0 + $0x18] sm:$0xf]
    %v28 = vld [vmem:[%s0 + $0x1c] sm:$0xff]
    %v29 = vld [vmem:[%s0 + $0x24] sm:$0xff]
    %v30 = vld [vmem:[%s0 + $0x2c] sm:$0xff]
    %v31 = vld [vmem:[%s0 + $0x34] sm:$0xf]
    %v32 = vld [vmem:[%s1] sm:$0xf]
    %v33 = vld [vmem:[%s1 + $0x4] sm:$0xf]
    %v34 = vld [vmem:[%s1 + $0x8] sm:$0xf]
    %v35 = vld [vmem:[%s1 + $0xc] sm:$0xf]
    %v36 = vld [vmem:[%s1 + $0x10] sm:$0xf]
    %v37 = vld [vmem:[%s1 + $0x14] sm:$0xf]
    %v38 = vld [vmem:[%s1 + $0x18] sm:$0xf]
    %v39 = vld [vmem:[%s1 + $0x1c] sm:$0xf]
    %v40 = vld [vmem:[%s1 + $0x20] sm:$0xf]
    %v41 = vld [vmem:[%s1 + $0x24] sm:$0xf]
    %v42 = vld [vmem:[%s1 + $0x28] sm:$0xf]
    %v43 = vld [vmem:[%s1 + $0x2c] sm:$0xf]
    %v44 = vld [vmem:[%s1 + $0x30] sm:$0xf]
    %v45 = vld [vmem:[%s1 + $0x34] sm:$0xf]
    %v46 = vld [vmem:[%s1 + $0x38] sm:$0xf]
    %v47 = vld [vmem:[%s1 + $0x3c] sm:$0xf]
    %v48 = vld [vmem:[%s1 + $0x40] sm:$0xf]
    %v49 = vld [vmem:[%s1 + $0x44] sm:$0xf]
    %v50 = vld [vmem:[%s1 + $0x48] sm:$0xf]
    %v51 = vld [vmem:[%s1 + $0x4c] sm:$0xf]
    %v52 = vld [vmem:[%s1 + $0x50] sm:$0xf]
    %v53 = vld [vmem:[%s1 + $0x54] sm:$0xf]
    %v54 = vld [vmem:[%s1 + $0x58] sm:$0xf]
    %v55 = vld [vmem:[%s1 + $0x5c] sm:$0xf]
    %v56 = vld [vmem:[%s1 + $0x60] sm:$0xf]
    %v57 = vld [vmem:[%s1 + $0x64] sm:$0xf]
    %v58 = vld [vmem:[%s1 + $0x68] sm:$0xf]
    %v59 = vld [vmem:[%s1 + $0x6c] sm:$0xf]
    %v60 = vld [vmem:[%s1 + $0x70] sm:$0xf]
    %v61 = vld [vmem:[%s1 + $0x74] sm:$0xf]
    %v62 = vld [vmem:[%s1 + $0x78] sm:$0xf]
    %v63 = vld [vmem:[%s1 + $0x7c] sm:$0xf]
    %v64 = vld [vmem:[%s1 + $0x80] sm:$0xf]
    %v65 = vld [vmem:[%s1 + $0x84] sm:$0xf]
    %v66 = vld [vmem:[%s1 + $0x88] sm:$0xf]
    %v67 = vld [vmem:[%s1 + $0x8c] sm:$0xf]
    %v68 = vld [vmem:[%s1 + $0x90] sm:$0xf]
    %v69 = vld [vmem:[%s1 + $0x94] sm:$0xf]
    %v70 = vld [vmem:[%s1 + $0x98] sm:$0xf]
    %v71 = vld [vmem:[%s1 + $0x9c] sm:$0xf]
    %v72 = vld [vmem:[%s1 + $0xa0] sm:$0xf]
    %v73 = vld [vmem:[%s1 + $0xa4] sm:$0xf]
    %v74 = vld [vmem:[%s1 + $0xa8] sm:$0xf]
    %v75 = vld [vmem:[%s1 + $0xac] sm:$0xf]
    %v76 = vld [vmem:[%s1 + $0xb0] sm:$0xf]
    %v77 = vld [vmem:[%s1 + $0xb4] sm:$0xf]
    %v78 = vld [vmem:[%s1 + $0xb8] sm:$0xf]
    %v79 = vld [vmem:[%s1 + $0xbc] sm:$0xf]
    %v80 = vld [vmem:[%s1 + $0xc0] sm:$0xf]
    %v81 = vld [vmem:[%s1 + $0xc4] sm:$0xf]
    %v82 = vld [vmem:[%s1 + $0xc8] sm:$0xf]
    %v83 = vld [vmem:[%s1 + $0xcc] sm:$0xf]
    %v84 = vld [vmem:[%s1 + $0xd0] sm:$0xf]
    %v85 = vld [vmem:[%s1 + $0xd4] sm:$0xf]
    %v86 = vld [vmem:[%s1 + $0xd8] sm:$0xf]
    %v87 = vld [vmem:[%s1 + $0xdc] sm:$0xf]
    %v88 = vld [vmem:[%s1 + $0xe0] sm:$0xf]
    %v89 = vld [vmem:[%s1 + $0xe4] sm:$0xf]
    %v90 = vld [vmem:[%s1 + $0xe8] sm:$0xf]
    %v91 = vld [vmem:[%s1 + $0xec] sm:$0xf]
    %v92 = vld [vmem:[%s1 + $0xf0] sm:$0xf]
    %v93 = vld [vmem:[%s1 + $0xf4] sm:$0xf]
    %v94 = vld [vmem:[%s1 + $0xf8] sm:$0xf]
    %v95 = vld [vmem:[%s1 + $0xfc] sm:$0xf]
    %v96 = vld [vmem:[%s1 + $0x100] sm:$0xf]
    %v97 = vld [vmem:[%s1 + $0x104] sm:$0xf]
    %v98 = vld [vmem:[%s1 + $0x108] sm:$0xf]
    %v99 = vld [vmem:[%s1 + $0x10c] sm:$0xf]
    %v100 = vld [vmem:[%s1 + $0x110] sm:$0xf]
    %v101 = vld [vmem:[%s1 + $0x114] sm:$0xf]
    %v102 = vld [vmem:[%s1 + $0x118] sm:$0xf]
    %v103 = vld [vmem:[%s1 + $0x11c] sm:$0xf]
    %v104 = vld [vmem:[%s1 + $0x120] sm:$0xf]
    %v105 = vld [vmem:[%s1 + $0x124] sm:$0xf]
    %v106 = vld [vmem:[%s1 + $0x128] sm:$0xf]
    %v107 = vld [vmem:[%s1 + $0x12c] sm:$0xf]
    %v108 = vld [vmem:[%s1 + $0x130] sm:$0xf]
    %v109 = vld [vmem:[%s1 + $0x134] sm:$0xf]
    %v110 = vld [vmem:[%s1 + $0x138] sm:$0xf]
    %v111 = vld [vmem:[%s1 + $0x13c] sm:$0xf]
    %v112 = vld [vmem:[%s1 + $0x140] sm:$0xf]
    %v113 = vld [vmem:[%s1 + $0x144] sm:$0xf]
    %v114 = vld [vmem:[%s1 + $0x148] sm:$0xf]
    %v115 = vld [vmem:[%s1 + $0x14c] sm:$0xf]
    %v116 = vld [vmem:[%s1 + $0x150] sm:$0xf]
    %v117 = vld [vmem:[%s1 + $0x154] sm:$0xf]
    %v118 = vld [vmem:[%s1 + $0x158] sm:$0xf]
    %v119 = vld [vmem:[%s1 + $0x15c] sm:$0xf]
    %v120 = vld [vmem:[%s1 + $0x160] sm:$0xf]
    %v121 = vld [vmem:[%s1 + $0x164] sm:$0xf]
    %v122 = vld [vmem:[%s1 + $0x168] sm:$0xf]
    %v123 = vld [vmem:[%s1 + $0x16c] sm:$0xf]
    %v124 = vld [vmem:[%s1 + $0x170] sm:$0xf]
    %v125 = vld [vmem:[%s1 + $0x174] sm:$0xf]
    %v126 = vld [vmem:[%s1 + $0x178] sm:$0xf]
    %v127 = vld [vmem:[%s1 + $0x17c] sm:$0xf]
    %v128 = vld [vmem:[%s1 + $0x180] sm:$0xf]
    %v129 = vld [vmem:[%s1 + $0x184] sm:$0xf]
    %v130 = vld [vmem:[%s1 + $0x188] sm:$0xf]
    %v131 = vld [vmem:[%s1 + $0x18c] sm:$0xf]
    %v132 = vld [vmem:[%s1 + $0x190] sm:$0xf]
    %v133 = vld [vmem:[%s1 + $0x194] sm:$0xf]
    %v134 = vld [vmem:[%s1 + $0x198] sm:$0xf]
    %v135 = vld [vmem:[%s1 + $0x19c] sm:$0xf]
    %v136 = vld [vmem:[%s1 + $0x1a0] sm:$0xf]
    %v137 = vld [vmem:[%s1 + $0x1a4] sm:$0xf]
    %v138 = vld [vmem:[%s1 + $0x1a8] sm:$0xf]
    %v139 = vld [vmem:[%s1 + $0x1ac] sm:$0xf]
    %v140 = vld [vmem:[%s1 + $0x1b0] sm:$0xf]
    %v141 = vld [vmem:[%s1 + $0x1b4] sm:$0xf]
    %v142 = vld [vmem:[%s1 + $0x1b8] sm:$0xf]
    %v143 = vld [vmem:[%s1 + $0x1bc] sm:$0xf]
    %v144 = vld [vmem:[%s2] sm:$0x1]
    %v146 = vperm.slane %v144, 0
    %v156 = vunpack.c.l.b16 %v24
    %v157 = vunpack.c.h.b16 %v24
    %v158 = vunpack.c.l.b16 %v25
    %v159 = vunpack.c.h.b16 %v25
    %v160 = vunpack.c.l.b16 %v26
    %v161 = vunpack.c.h.b16 %v26
    %v162 = vunpack.c.l.b16 %v27
    %v163 = vunpack.c.l.b16 %v28
    %v164 = vunpack.c.h.b16 %v28
    %v165 = vunpack.c.l.b16 %v29
    %v166 = vunpack.c.h.b16 %v29
    %v167 = vunpack.c.l.b16 %v30
    %v168 = vunpack.c.h.b16 %v30
    %v169 = vunpack.c.l.b16 %v31
    %v170 = vpack.c.b16 %v163, %v156
    %v171 = vpack.c.b16 %v164, %v157
    %v172 = vpack.c.b16 %v165, %v158
    %v173 = vpack.c.b16 %v166, %v159
    %v174 = vpack.c.b16 %v167, %v160
    %v175 = vpack.c.b16 %v168, %v161
    %v176 = vpack.c.b16 %v169, %v162
    %v296 = vunpack.c.l.b16 %v32
    %v297 = vunpack.c.l.b16 %v33
    %v298 = vunpack.c.l.b16 %v34
    %v299 = vunpack.c.l.b16 %v35
    %v300 = vunpack.c.l.b16 %v36
    %v301 = vunpack.c.l.b16 %v37
    %v302 = vunpack.c.l.b16 %v38
    %v303 = vunpack.c.l.b16 %v39
    %v304 = vunpack.c.l.b16 %v40
    %v305 = vunpack.c.l.b16 %v41
    %v306 = vunpack.c.l.b16 %v42
    %v307 = vunpack.c.l.b16 %v43
    %v308 = vunpack.c.l.b16 %v44
    %v309 = vunpack.c.l.b16 %v45
    %v310 = vunpack.c.l.b16 %v46
    %v311 = vunpack.c.l.b16 %v47
    %v312 = vunpack.c.l.b16 %v48
    %v313 = vunpack.c.l.b16 %v49
    %v314 = vunpack.c.l.b16 %v50
    %v315 = vunpack.c.l.b16 %v51
    %v316 = vunpack.c.l.b16 %v52
    %v317 = vunpack.c.l.b16 %v53
    %v318 = vunpack.c.l.b16 %v54
    %v319 = vunpack.c.l.b16 %v55
    %v320 = vunpack.c.l.b16 %v56
    %v321 = vunpack.c.l.b16 %v57
    %v322 = vunpack.c.l.b16 %v58
    %v323 = vunpack.c.l.b16 %v59
    %v324 = vunpack.c.l.b16 %v60
    %v325 = vunpack.c.l.b16 %v61
    %v326 = vunpack.c.l.b16 %v62
    %v327 = vunpack.c.l.b16 %v63
    %v328 = vunpack.c.l.b16 %v64
    %v329 = vunpack.c.l.b16 %v65
    %v330 = vunpack.c.l.b16 %v66
    %v331 = vunpack.c.l.b16 %v67
    %v332 = vunpack.c.l.b16 %v68
    %v333 = vunpack.c.l.b16 %v69
    %v334 = vunpack.c.l.b16 %v70
    %v335 = vunpack.c.l.b16 %v71
    %v336 = vunpack.c.l.b16 %v72
    %v337 = vunpack.c.l.b16 %v73
    %v338 = vunpack.c.l.b16 %v74
    %v339 = vunpack.c.l.b16 %v75
    %v340 = vunpack.c.l.b16 %v76
    %v341 = vunpack.c.l.b16 %v77
    %v342 = vunpack.c.l.b16 %v78
    %v343 = vunpack.c.l.b16 %v79
    %v344 = vunpack.c.l.b16 %v80
    %v345 = vunpack.c.l.b16 %v81
    %v346 = vunpack.c.l.b16 %v82
    %v347 = vunpack.c.l.b16 %v83
    %v348 = vunpack.c.l.b16 %v84
    %v349 = vunpack.c.l.b16 %v85
    %v350 = vunpack.c.l.b16 %v86
    %v351 = vunpack.c.l.b16 %v87
    %v352 = vunpack.c.l.b16 %v88
    %v353 = vunpack.c.l.b16 %v89
    %v354 = vunpack.c.l.b16 %v90
    %v355 = vunpack.c.l.b16 %v91
    %v356 = vunpack.c.l.b16 %v92
    %v357 = vunpack.c.l.b16 %v93
    %v358 = vunpack.c.l.b16 %v94
    %v359 = vunpack.c.l.b16 %v95
    %v360 = vunpack.c.l.b16 %v96
    %v361 = vunpack.c.l.b16 %v97
    %v362 = vunpack.c.l.b16 %v98
    %v363 = vunpack.c.l.b16 %v99
    %v364 = vunpack.c.l.b16 %v100
    %v365 = vunpack.c.l.b16 %v101
    %v366 = vunpack.c.l.b16 %v102
    %v367 = vunpack.c.l.b16 %v103
    %v368 = vunpack.c.l.b16 %v104
    %v369 = vunpack.c.l.b16 %v105
    %v370 = vunpack.c.l.b16 %v106
    %v371 = vunpack.c.l.b16 %v107
    %v372 = vunpack.c.l.b16 %v108
    %v373 = vunpack.c.l.b16 %v109
    %v374 = vunpack.c.l.b16 %v110
    %v375 = vunpack.c.l.b16 %v111
    %v376 = vunpack.c.l.b16 %v112
    %v377 = vunpack.c.l.b16 %v113
    %v378 = vunpack.c.l.b16 %v114
    %v379 = vunpack.c.l.b16 %v115
    %v380 = vunpack.c.l.b16 %v116
    %v381 = vunpack.c.l.b16 %v117
    %v382 = vunpack.c.l.b16 %v118
    %v383 = vunpack.c.l.b16 %v119
    %v384 = vunpack.c.l.b16 %v120
    %v385 = vunpack.c.l.b16 %v121
    %v386 = vunpack.c.l.b16 %v122
    %v387 = vunpack.c.l.b16 %v123
    %v388 = vunpack.c.l.b16 %v124
    %v389 = vunpack.c.l.b16 %v125
    %v390 = vunpack.c.l.b16 %v126
    %v391 = vunpack.c.l.b16 %v127
    %v392 = vunpack.c.l.b16 %v128
    %v393 = vunpack.c.l.b16 %v129
    %v394 = vunpack.c.l.b16 %v130
    %v395 = vunpack.c.l.b16 %v131
    %v396 = vunpack.c.l.b16 %v132
    %v397 = vunpack.c.l.b16 %v133
    %v398 = vunpack.c.l.b16 %v134
    %v399 = vunpack.c.l.b16 %v135
    %v400 = vunpack.c.l.b16 %v136
    %v401 = vunpack.c.l.b16 %v137
    %v402 = vunpack.c.l.b16 %v138
    %v403 = vunpack.c.l.b16 %v139
    %v404 = vunpack.c.l.b16 %v140
    %v405 = vunpack.c.l.b16 %v141
    %v406 = vunpack.c.l.b16 %v142
    %v407 = vunpack.c.l.b16 %v143
    %v408 = vpack.c.b16 %v297, %v296
    %v409 = vpack.c.b16 %v299, %v298
    %v410 = vpack.c.b16 %v301, %v300
    %v411 = vpack.c.b16 %v303, %v302
    %v412 = vpack.c.b16 %v305, %v304
    %v413 = vpack.c.b16 %v307, %v306
    %v414 = vpack.c.b16 %v309, %v308
    %v415 = vpack.c.b16 %v311, %v310
    %v416 = vpack.c.b16 %v313, %v312
    %v417 = vpack.c.b16 %v315, %v314
    %v418 = vpack.c.b16 %v317, %v316
    %v419 = vpack.c.b16 %v319, %v318
    %v420 = vpack.c.b16 %v321, %v320
    %v421 = vpack.c.b16 %v323, %v322
    %v422 = vpack.c.b16 %v325, %v324
    %v423 = vpack.c.b16 %v327, %v326
    %v424 = vpack.c.b16 %v329, %v328
    %v425 = vpack.c.b16 %v331, %v330
    %v426 = vpack.c.b16 %v333, %v332
    %v427 = vpack.c.b16 %v335, %v334
    %v428 = vpack.c.b16 %v337, %v336
    %v429 = vpack.c.b16 %v339, %v338
    %v430 = vpack.c.b16 %v341, %v340
    %v431 = vpack.c.b16 %v343, %v342
    %v432 = vpack.c.b16 %v345, %v344
    %v433 = vpack.c.b16 %v347, %v346
    %v434 = vpack.c.b16 %v349, %v348
    %v435 = vpack.c.b16 %v351, %v350
    %v436 = vpack.c.b16 %v353, %v352
    %v437 = vpack.c.b16 %v355, %v354
    %v438 = vpack.c.b16 %v357, %v356
    %v439 = vpack.c.b16 %v359, %v358
    %v440 = vpack.c.b16 %v361, %v360
    %v441 = vpack.c.b16 %v363, %v362
    %v442 = vpack.c.b16 %v365, %v364
    %v443 = vpack.c.b16 %v367, %v366
    %v444 = vpack.c.b16 %v369, %v368
    %v445 = vpack.c.b16 %v371, %v370
    %v446 = vpack.c.b16 %v373, %v372
    %v447 = vpack.c.b16 %v375, %v374
    %v448 = vpack.c.b16 %v377, %v376
    %v449 = vpack.c.b16 %v379, %v378
    %v450 = vpack.c.b16 %v381, %v380
    %v451 = vpack.c.b16 %v383, %v382
    %v452 = vpack.c.b16 %v385, %v384
    %v453 = vpack.c.b16 %v387, %v386
    %v454 = vpack.c.b16 %v389, %v388
    %v455 = vpack.c.b16 %v391, %v390
    %v456 = vpack.c.b16 %v393, %v392
    %v457 = vpack.c.b16 %v395, %v394
    %v458 = vpack.c.b16 %v397, %v396
    %v459 = vpack.c.b16 %v399, %v398
    %v460 = vpack.c.b16 %v401, %v400
    %v461 = vpack.c.b16 %v403, %v402
    %v462 = vpack.c.b16 %v405, %v404
    %v463 = vpack.c.b16 %v407, %v406
    %520 = vmatpush.bf16.msra.mxu0 %v415
    %521 = vmatpush.bf16.msra.mxu0 %v414
    %522 = vmatpush.bf16.msra.mxu0 %v413
    %523 = vmatpush.bf16.msra.mxu0 %v412
    %524 = vmatpush.bf16.msra.mxu0 %v411
    %525 = vmatpush.bf16.msra.mxu0 %v410
    %526 = vmatpush.bf16.msra.mxu0 %v409
    %527 = vmatpush.bf16.msra.mxu0 %v408
    %528 = vmatmul.bf16.gmra.mxu0 %v170
    %v529 = vpop.f32.mrf.mxu0
    %v530 = vadd.f32 %v146, %v529
    %v531 = vpop.f32.mrf.mxu0
    %v532 = vadd.f32 %v146, %v531
    %533 = vdwg.mxu0
    %534 = vmatpush.bf16.msra.mxu0 %v423
    %535 = vmatpush.bf16.msra.mxu0 %v422
    %536 = vmatpush.bf16.msra.mxu0 %v421
    %537 = vmatpush.bf16.msra.mxu0 %v420
    %538 = vmatpush.bf16.msra.mxu0 %v419
    %539 = vmatpush.bf16.msra.mxu0 %v418
    %540 = vmatpush.bf16.msra.mxu0 %v417
    %541 = vmatpush.bf16.msra.mxu0 %v416
    %542 = vmatmul.bf16.gmra.mxu0 %v171
    %v543 = vpop.f32.mrf.mxu0
    %v544 = vadd.f32 %v530, %v543
    %v545 = vpop.f32.mrf.mxu0
    %v546 = vadd.f32 %v532, %v545
    %547 = vdwg.mxu0
    %548 = vmatpush.bf16.msra.mxu0 %v431
    %549 = vmatpush.bf16.msra.mxu0 %v430
    %550 = vmatpush.bf16.msra.mxu0 %v429
    %551 = vmatpush.bf16.msra.mxu0 %v428
    %552 = vmatpush.bf16.msra.mxu0 %v427
    %553 = vmatpush.bf16.msra.mxu0 %v426
    %554 = vmatpush.bf16.msra.mxu0 %v425
    %555 = vmatpush.bf16.msra.mxu0 %v424
    %556 = vmatmul.bf16.gmra.mxu0 %v172
    %v557 = vpop.f32.mrf.mxu0
    %v558 = vadd.f32 %v544, %v557
    %v559 = vpop.f32.mrf.mxu0
    %v560 = vadd.f32 %v546, %v559
    %561 = vdwg.mxu0
    %562 = vmatpush.bf16.msra.mxu0 %v439
    %563 = vmatpush.bf16.msra.mxu0 %v438
    %564 = vmatpush.bf16.msra.mxu0 %v437
    %565 = vmatpush.bf16.msra.mxu0 %v436
    %566 = vmatpush.bf16.msra.mxu0 %v435
    %567 = vmatpush.bf16.msra.mxu0 %v434
    %568 = vmatpush.bf16.msra.mxu0 %v433
    %569 = vmatpush.bf16.msra.mxu0 %v432
    %570 = vmatmul.bf16.gmra.mxu0 %v173
    %v571 = vpop.f32.mrf.mxu0
    %v572 = vadd.f32 %v558, %v571
    %v573 = vpop.f32.mrf.mxu0
    %v574 = vadd.f32 %v560, %v573
    %575 = vdwg.mxu0
    %576 = vmatpush.bf16.msra.mxu0 %v447
    %577 = vmatpush.bf16.msra.mxu0 %v446
    %578 = vmatpush.bf16.msra.mxu0 %v445
    %579 = vmatpush.bf16.msra.mxu0 %v444
    %580 = vmatpush.bf16.msra.mxu0 %v443
    %581 = vmatpush.bf16.msra.mxu0 %v442
    %582 = vmatpush.bf16.msra.mxu0 %v441
    %583 = vmatpush.bf16.msra.mxu0 %v440
    %584 = vmatmul.bf16.gmra.mxu0 %v174
    %v585 = vpop.f32.mrf.mxu0
    %v586 = vadd.f32 %v572, %v585
    %v587 = vpop.f32.mrf.mxu0
    %v588 = vadd.f32 %v574, %v587
    %589 = vdwg.mxu0
    %590 = vmatpush.bf16.msra.mxu0 %v455
    %591 = vmatpush.bf16.msra.mxu0 %v454
    %592 = vmatpush.bf16.msra.mxu0 %v453
    %593 = vmatpush.bf16.msra.mxu0 %v452
    %594 = vmatpush.bf16.msra.mxu0 %v451
    %595 = vmatpush.bf16.msra.mxu0 %v450
    %596 = vmatpush.bf16.msra.mxu0 %v449
    %597 = vmatpush.bf16.msra.mxu0 %v448
    %598 = vmatmul.bf16.gmra.mxu0 %v175
    %v599 = vpop.f32.mrf.mxu0
    %v600 = vadd.f32 %v586, %v599
    %v601 = vpop.f32.mrf.mxu0
    %v602 = vadd.f32 %v588, %v601
    %603 = vdwg.mxu0
    %604 = vmatpush.bf16.msra.mxu0 %v463
    %605 = vmatpush.bf16.msra.mxu0 %v462
    %606 = vmatpush.bf16.msra.mxu0 %v461
    %607 = vmatpush.bf16.msra.mxu0 %v460
    %608 = vmatpush.bf16.msra.mxu0 %v459
    %609 = vmatpush.bf16.msra.mxu0 %v458
    %610 = vmatpush.bf16.msra.mxu0 %v457
    %611 = vmatpush.bf16.msra.mxu0 %v456
    %612 = vmatmul.bf16.gmra.mxu0 %v176
    %v613 = vpop.f32.mrf.mxu0
    %v614 = vadd.f32 %v600, %v613
    %v615 = vpop.f32.mrf.mxu0
    %v616 = vadd.f32 %v602, %v615
    %617 = vdwg.mxu0
    %v618 = vmax.f32 %v614, 0.0
    %v619 = vmax.f32 %v616, 0.0
    %v620 = vld [vmem:[%s3] sm:$0x3]
    %vm621 = vcmask 130048
    %v623 = vsel %vm621, %v620, 0
    %625 = vmatpush.msra.mxu0 0.0
    %626 = vmatpush.msra.mxu0 0.0
    %627 = vmatpush.msra.mxu0 0.0
    %628 = vmatpush.msra.mxu0 0.0
    %629 = vmatpush.msra.mxu0 0.0
    %630 = vmatpush.msra.mxu0 0.0
    %631 = vmatpush.msra.mxu0 0.0
    %632 = vmatpush.msra.mxu0 0.0
    %633 = vmatpush.msra.mxu0 0.0
    %634 = vmatpush.msra.mxu0 0.0
    %635 = vmatpush.msra.mxu0 0.0
    %636 = vmatpush.msra.mxu0 0.0
    %637 = vmatpush.msra.mxu0 0.0
    %638 = vmatpush.msra.mxu0 0.0
    %639 = vmatpush.msra.mxu0 %v619
    %640 = vmatpush.msra.mxu0 %v618
    %641 = vmatmul.f32.gmra.mxu0 %v623
    %v642 = vpop.f32.mrf.mxu0
    %v643 = vadd.f32 0.0, %v642
    %644 = vdwg.mxu0
    %v645 = vld [vmem:[%s4] sm:$0xff]
    %v646 = vld [vmem:[%s4 + $0x8] sm:$0xff]
    %v647 = vld [vmem:[%s4 + $0x10] sm:$0xff]
    %v648 = vld [vmem:[%s4 + $0x18] sm:$0xff]
    %v649 = vld [vmem:[%s4 + $0x20] sm:$0xff]
    %v650 = vld [vmem:[%s4 + $0x28] sm:$0xff]
    %v651 = vld [vmem:[%s4 + $0x30] sm:$0xff]
    %v652 = vld [vmem:[%s4 + $0x38] sm:$0xff]
    %v653 = vld [vmem:[%s5] sm:$0x1]
    %v655 = vperm.slane %v653, 0
    %vm657 = vcmask 523264
    %v659 = vsel %vm657, %v643, 0
    %661 = vmatpush.msra.mxu0 0.0
    %662 = vmatpush.msra.mxu0 0.0
    %663 = vmatpush.msra.mxu0 0.0
    %664 = vmatpush.msra.mxu0 0.0
    %665 = vmatpush.msra.mxu0 0.0
    %666 = vmatpush.msra.mxu0 0.0
    %667 = vmatpush.msra.mxu0 0.0
    %668 = vmatpush.msra.mxu0 0.0
    %669 = vmatpush.msra.mxu0 %v652
    %670 = vmatpush.msra.mxu0 %v651
    %671 = vmatpush.msra.mxu0 %v650
    %672 = vmatpush.msra.mxu0 %v649
    %673 = vmatpush.msra.mxu0 %v648
    %674 = vmatpush.msra.mxu0 %v647
    %675 = vmatpush.msra.mxu0 %v646
    %676 = vmatpush.msra.mxu0 %v645
    %677 = vmatmul.f32.gmra.mxu0 %v659
    %v678 = vpop.f32.mrf.mxu0
    %v679 = vadd.f32 %v655, %v678
    %680 = vdwg.mxu0
    %vm681 = vcmask 74752
    %682 = vst.msk [vmem:[#allocation2] sm:$0x3] %vm681, %v679
    // Predicated region
    $region26: #{efficient3dcnn_forward.3} parent=1 // pred_check
      _
    $region27: #{efficient3dcnn_forward.3} parent=1 // pred_check_branch
      %684 = sbr.rel (0) target = $region29
    $region28: #{efficient3dcnn_forward.3} parent=1 // pred_region
      %686 = vsyncadd [#allocation3], 0
      %s688 = sshll.u32 [#allocation2], 4
      %s689 = int_to_ptr.vmem [resolvable:$true] %s688
      %s690 = sshll.u32 %s6, 4
      %s691 = int_to_ptr.hbm [resolvable:$true] %s690
      %693 = dma.vmem_to_hbm [thread:$0]  %s689, 32, %s691, [#allocation3]
    $region29: #{efficient3dcnn_forward.3} parent=1 // pred_fallthru
      _
    // Predicated region
    $region30: #{efficient3dcnn_forward.3} parent=1 // pred_check
      _
    $region31: #{efficient3dcnn_forward.3} parent=1 // pred_check_branch
      %695 = sbr.rel (0) target = $region33
    $region32: #{efficient3dcnn_forward.3} parent=1 // pred_region
      %697 = dma.done [#allocation3], 32
    $region33: #{efficient3dcnn_forward.3} parent=1 // pred_fallthru
      _
    %698 = vsyncpa [#allocation3], 1

</llo_original>
